<compile_context>
chip_gen: v7x
topology: tpu7x:2x2x1
jax: 0.10.0
libtpu: 0.0.40
codegen_flags: <defaults>
</compile_context>

<pallas_src>
import jax
import jax.numpy as jnp
from jax.experimental import pallas as pl
from jax.experimental.pallas import tpu as pltpu


def _round_up(n: int, m: int) -> int:
    return ((n + m - 1) // m) * m


def _cdiv(a: int, b: int) -> int:
    return (a + b - 1) // b


def _fused_head_kernel(res_ref, clip_ref, wr_ref, wc_ref, bias_ref, o_ref):
    # res_ref : (TILE_R, D_res)   rows of ResNet-50 features (streamed)
    # clip_ref: (TILE_R, D_clip)  rows of CLIP image features (streamed)
    # wr_ref  : (D_res,  D_out)   resident across grid steps
    # wc_ref  : (D_clip, D_out)   resident across grid steps
    # bias_ref: (1, D_out)        resident, pre-folded (b_res + b_clip), f32
    # o_ref   : (TILE_R, D_out)   lane-dense (D_out multiple of 128)
    acc = jnp.dot(res_ref[...], wr_ref[...], preferred_element_type=jnp.float32)
    acc = acc + jnp.dot(clip_ref[...], wc_ref[...],
                        preferred_element_type=jnp.float32)
    acc = acc + bias_ref[...]          # row broadcast of the folded bias
    o_ref[...] = acc.astype(o_ref.dtype)


def res_embedder_head(res_feat, clip_feat, w_res, b_res, w_clip, b_clip, *,
                      tile_rows: int | None = None, out_dtype=jnp.float32):
    """Fused projection head of ResEmbedder.

    res_feat : (B, L, D_res)   per-frame ResNet-50 features (bf16 preferred)
    clip_feat: (B, L, D_clip)  per-frame CLIP image embeddings (bf16 preferred)
    w_res    : (D_res, D_out),  b_res : (D_out,)
    w_clip   : (D_clip, D_out), b_clip: (D_out,)
    returns  : (B, L, D_out)   == linear(res_feat) + clip_linear(clip_feat)
    """
    B, L, d_res = res_feat.shape
    _, _, d_clip = clip_feat.shape
    d_out = w_res.shape[-1]
    n = B * L

    res2d = res_feat.reshape(n, d_res)
    clip2d = clip_feat.reshape(n, d_clip)
    # Fold the two biases once on the host -> a single resident f32 input.
    bias2d = (b_res.astype(jnp.float32) + b_clip.astype(jnp.float32)).reshape(1, d_out)

    res_isz = jnp.dtype(res_feat.dtype).itemsize
    clip_isz = jnp.dtype(clip_feat.dtype).itemsize
    out_isz = jnp.dtype(out_dtype).itemsize
    w_bytes = (w_res.size * jnp.dtype(w_res.dtype).itemsize
               + w_clip.size * jnp.dtype(w_clip.dtype).itemsize
               + bias2d.size * 4)

    stream_isz = max(res_isz, clip_isz)
    row_align = 8 if stream_isz >= 4 else (16 if stream_isz == 2 else 32)

    if tile_rows is None:
        tile_rows = 2048 if stream_isz <= 2 else 1024

    # Cap the tile so the "parallel" grid has >= 2 steps for large n
    # (megacore on v7x); tiny inputs collapse to a single step.
    half_rows = max(row_align, _round_up(_cdiv(n, 2), row_align))
    tile_r = max(row_align, min(_round_up(tile_rows, row_align), half_rows))

    def footprint(tr: int) -> int:
        # double-buffered streamed blocks + resident weights/bias
        dbuf = 2 * tr * (d_res * res_isz + d_clip * clip_isz + d_out * out_isz)
        return dbuf + w_bytes

    VMEM_BUDGET = 40 << 20   # safe on v7x (64 MiB/TC) and v5e/v6e (128 MiB)
    while tile_r > row_align and footprint(tile_r) > VMEM_BUDGET:
        tile_r = max(row_align, _round_up(tile_r // 2, row_align))

    # Ragged tail: Pallas masks the partial last block; no host-side padding.
    grid = (_cdiv(n, tile_r),)

    cost = pl.CostEstimate(
        flops=2 * n * (d_res + d_clip) * d_out,
        transcendentals=0,
        bytes_accessed=n * (d_res * res_isz + d_clip * clip_isz
                            + d_out * out_isz) + w_bytes,
    )

    out2d = pl.pallas_call(
        _fused_head_kernel,
        out_shape=jax.ShapeDtypeStruct((n, d_out), out_dtype),
        grid_spec=pltpu.PrefetchScalarGridSpec(
            num_scalar_prefetch=0,
            grid=grid,
            in_specs=[
                pl.BlockSpec((tile_r, d_res), lambda r: (r, 0)),
                pl.BlockSpec((tile_r, d_clip), lambda r: (r, 0)),
                pl.BlockSpec((d_res, d_out), lambda r: (0, 0)),   # resident
                pl.BlockSpec((d_clip, d_out), lambda r: (0, 0)),  # resident
                pl.BlockSpec((1, d_out), lambda r: (0, 0)),       # resident
            ],
            out_specs=pl.BlockSpec((tile_r, d_out), lambda r: (r, 0)),
        ),
        compiler_params=pltpu.CompilerParams(
            # Independent row tiles -> shards across both TensorCores on v7x;
            # neutral on v5e/v6e.
            dimension_semantics=("parallel",),
            # v5e scoped default is only 16 MiB; raise explicitly but stay
            # well under v7x's 64 MiB per-core physical VMEM.
            vmem_limit_bytes=int(min(48 << 20,
                                     max(16 << 20, footprint(tile_r) + (8 << 20)))),
        ),
        cost_estimate=cost,
    )(res2d, clip2d, w_res, w_clip, bias2d)

    return out2d.reshape(B, L, d_out)


if __name__ == "__main__":
    B, L = 2, 8
    D_RES_RAW, D_CLIP, CLIP_DIM = 1000, 1024, 256
    D_RES = 1024   # ResNet feature row padded 1000 -> 1024 upstream (K-aligned)

    key = jax.random.PRNGKey(0)
    k1, k2, k3, k4, k5, k6 = jax.random.split(key, 6)

    # Backbone outputs are stand-ins for resnet50(x) and clip.encode_image(x).
    # Per the perf review they are produced upstream in bf16, and the ResNet
    # feature row is zero-padded to 1024 where it is written (simulated here
    # at construction time, not as a per-call pad of a kernel input).
    res_raw = jax.random.normal(k1, (B, L, D_RES_RAW), dtype=jnp.bfloat16)
    clip_feat = jax.random.normal(k2, (B, L, D_CLIP), dtype=jnp.bfloat16)
    res_feat = jnp.concatenate(
        [res_raw, jnp.zeros((B, L, D_RES - D_RES_RAW), jnp.bfloat16)], axis=-1)

    w_res_raw = (jax.random.normal(k3, (D_RES_RAW, CLIP_DIM), jnp.float32)
                 * 0.02).astype(jnp.bfloat16)
    b_res = jax.random.normal(k4, (CLIP_DIM,), jnp.float32) * 0.02
    w_clip = (jax.random.normal(k5, (D_CLIP, CLIP_DIM), jnp.float32)
              * 0.02).astype(jnp.bfloat16)
    b_clip = jax.random.normal(k6, (CLIP_DIM,), jnp.float32) * 0.02
    # Matching zero rows in the res weight so the padded K columns are inert.
    w_res = jnp.concatenate(
        [w_res_raw, jnp.zeros((D_RES - D_RES_RAW, CLIP_DIM), jnp.bfloat16)], axis=0)

    out = res_embedder_head(res_feat, clip_feat, w_res, b_res, w_clip, b_clip)
    out = jax.block_until_ready(out)

    # Plain-JAX f32 reference from the same (bf16-representable) inputs,
    # using the original unpadded K=1000 res branch.
    n = B * L
    ref = (res_raw.reshape(n, D_RES_RAW).astype(jnp.float32)
           @ w_res_raw.astype(jnp.float32) + b_res
           + clip_feat.reshape(n, D_CLIP).astype(jnp.float32)
           @ w_clip.astype(jnp.float32) + b_clip).reshape(B, L, CLIP_DIM)

    assert out.shape == (B, L, CLIP_DIM)
    assert out.dtype == jnp.float32
    assert jnp.allclose(out, ref, atol=1e-2, rtol=1e-2), "mismatch vs reference"

    print("KERNEL_OK")
</pallas_src>

<mosaic_0001>
module attributes {stable_mosaic.version = 11 : i64} {
  func.func @_fused_head_kernel(%arg0: i32, %arg1: memref<16x1024xbf16, #tpu.memory_space<vmem>>, %arg2: memref<16x1024xbf16, #tpu.memory_space<vmem>>, %arg3: memref<1024x256xbf16, #tpu.memory_space<vmem>>, %arg4: memref<1024x256xbf16, #tpu.memory_space<vmem>>, %arg5: memref<1x256xf32, #tpu.memory_space<vmem>>, %arg6: memref<16x256xf32, #tpu.memory_space<vmem>>) attributes {dimension_semantics = [#tpu.dimension_semantics<parallel>], iteration_bounds = array<i64: 1>, scalar_prefetch = 0 : i64, scratch_operands = 0 : i64, tpu.core_type = #tpu.core_type<tc>, window_params = [{transform_indices = @transform_0, window_bounds = array<i64: 16, 1024>}, {transform_indices = @transform_1, window_bounds = array<i64: 16, 1024>}, {pipeline_mode = #tpu.pipeline_mode<synchronous>, transform_indices = @transform_2, window_bounds = array<i64: 1024, 256>}, {pipeline_mode = #tpu.pipeline_mode<synchronous>, transform_indices = @transform_3, window_bounds = array<i64: 1024, 256>}, {pipeline_mode = #tpu.pipeline_mode<synchronous>, transform_indices = @transform_4, window_bounds = array<i64: 1, 256>}, {transform_indices = @transform_5, window_bounds = array<i64: 16, 256>}]} {
    %c0 = arith.constant 0 : index
    %c0_0 = arith.constant 0 : index
    %0 = vector.load %arg1[%c0, %c0_0] : memref<16x1024xbf16, #tpu.memory_space<vmem>>, vector<16x1024xbf16>
    %c0_1 = arith.constant 0 : index
    %c0_2 = arith.constant 0 : index
    %1 = vector.load %arg3[%c0_1, %c0_2] : memref<1024x256xbf16, #tpu.memory_space<vmem>>, vector<1024x256xbf16>
    %cst = arith.constant dense<0.000000e+00> : vector<16x256xf32>
    %2 = tpu.matmul %0, %1, %cst {dimension_numbers = #tpu.dot_dimension_numbers<[1], [0], [0], [1], [0, 0, 1, 1], [], []>} : vector<16x1024xbf16>, vector<1024x256xbf16>, vector<16x256xf32> -> vector<16x256xf32>
    %c0_3 = arith.constant 0 : index
    %c0_4 = arith.constant 0 : index
    %3 = vector.load %arg2[%c0_3, %c0_4] : memref<16x1024xbf16, #tpu.memory_space<vmem>>, vector<16x1024xbf16>
    %c0_5 = arith.constant 0 : index
    %c0_6 = arith.constant 0 : index
    %4 = vector.load %arg4[%c0_5, %c0_6] : memref<1024x256xbf16, #tpu.memory_space<vmem>>, vector<1024x256xbf16>
    %cst_7 = arith.constant dense<0.000000e+00> : vector<16x256xf32>
    %5 = tpu.matmul %3, %4, %cst_7 {dimension_numbers = #tpu.dot_dimension_numbers<[1], [0], [0], [1], [0, 0, 1, 1], [], []>} : vector<16x1024xbf16>, vector<1024x256xbf16>, vector<16x256xf32> -> vector<16x256xf32>
    %6 = arith.addf %2, %5 : vector<16x256xf32>
    %c0_8 = arith.constant 0 : index
    %c0_9 = arith.constant 0 : index
    %7 = vector.load %arg5[%c0_8, %c0_9] : memref<1x256xf32, #tpu.memory_space<vmem>>, vector<1x256xf32>
    %8 = vector.broadcast %7 : vector<1x256xf32> to vector<16x256xf32>
    %9 = arith.addf %6, %8 : vector<16x256xf32>
    %c0_10 = arith.constant 0 : index
    %c0_11 = arith.constant 0 : index
    %10 = vector.load %arg6[%c0_10, %c0_11] : memref<16x256xf32, #tpu.memory_space<vmem>>, vector<16x256xf32>
    tpu.vector_store %arg6[%c0_10, %c0_11], %9 {strides = array<i32>} : memref<16x256xf32, #tpu.memory_space<vmem>>, vector<16x256xf32>,
    return
  }
  func.func @transform_0(%arg0: i32) -> (i32, i32) {
    %c0_i32 = arith.constant 0 : i32
    %c0_i32_0 = arith.constant 0 : i32
    return %arg0, %c0_i32 : i32, i32
  }
  func.func @transform_1(%arg0: i32) -> (i32, i32) {
    %c0_i32 = arith.constant 0 : i32
    %c0_i32_0 = arith.constant 0 : i32
    return %arg0, %c0_i32 : i32, i32
  }
  func.func @transform_2(%arg0: i32) -> (i32, i32) {
    %c0_i32 = arith.constant 0 : i32
    %c0_i32_0 = arith.constant 0 : i32
    %c0_i32_1 = arith.constant 0 : i32
    return %c0_i32, %c0_i32_0 : i32, i32
  }
  func.func @transform_3(%arg0: i32) -> (i32, i32) {
    %c0_i32 = arith.constant 0 : i32
    %c0_i32_0 = arith.constant 0 : i32
    %c0_i32_1 = arith.constant 0 : i32
    return %c0_i32, %c0_i32_0 : i32, i32
  }
  func.func @transform_4(%arg0: i32) -> (i32, i32) {
    %c0_i32 = arith.constant 0 : i32
    %c0_i32_0 = arith.constant 0 : i32
    %c0_i32_1 = arith.constant 0 : i32
    return %c0_i32, %c0_i32_0 : i32, i32
  }
  func.func @transform_5(%arg0: i32) -> (i32, i32) {
    %c0_i32 = arith.constant 0 : i32
    %c0_i32_0 = arith.constant 0 : i32
    return %arg0, %c0_i32 : i32, i32
  }
}

</mosaic_0001>

<llo_original>
// kernel: tpu_custom_call.1
$region0: #{tpu_custom_call.1}
  #allocation0 [shape = 'u32[]', space=smem, size = 0x4, offset = 0x4, fixed_abs, tag = 'smem constant byte address 0x4 - core index']
  #allocation1 [shape = 'u32[144,128]{1,0:T(1,128)}', space=vmem, size = 0x12000, scoped, tag = 'internal scratch']
  %s0 = inlined_call_operand.hbm [shape: bf16[16,1024], index: 0, kind: input, shape index: {}]
  %s1 = inlined_call_operand.hbm [shape: bf16[16,1024], index: 1, kind: input, shape index: {}]
  %s2 = inlined_call_operand.hbm [shape: bf16[1024,256], index: 2, kind: input, shape index: {}]
  %s3 = inlined_call_operand.hbm [shape: bf16[1024,256], index: 3, kind: input, shape index: {}]
  %s4 = inlined_call_operand.vmem [shape: f32[1,256], index: 4, kind: input, shape index: {}]
  %s5 = inlined_call_operand.hbm [shape: f32[16,256], index: 5, kind: output, shape index: {}]
  %s6 = sld [smem:[#allocation0]]
  $region46: #{tpu_custom_call.1} parent=0
    _
  %s8 = ssub.s32 1, %s6
  %s9 = scalar_select 0, %s8, %s6
  $region1: #{tpu_custom_call.1} parent=0
    #allocation2 [shape = 'u8[32768]{0}', space=vmem, size = 0x8000, scoped, tag = 'input window, operand 0, single buffered']
    #allocation3 [shape = 's32[1]{0}', space=sflag, size = 0x4, scoped, tag = 'scoped memory for tpu_custom_call.1']
    #allocation4 [shape = 's32[1]{0}', space=sflag, size = 0x4, scoped, tag = 'scoped memory for tpu_custom_call.1']
    #allocation5 [shape = 'u8[32768]{0}', space=vmem, size = 0x8000, scoped, tag = 'input window, operand 1, single buffered']
    #allocation6 [shape = 's32[1]{0}', space=sflag, size = 0x4, scoped, tag = 'scoped memory for tpu_custom_call.1']
    #allocation7 [shape = 'u8[524288]{0}', space=vmem, size = 0x80000, scoped, tag = 'input window, operand 2, single buffered']
    #allocation8 [shape = 'u8[524288]{0}', space=vmem, size = 0x80000, scoped, tag = 'input window, operand 3, single buffered']
    #allocation9 [shape = 's32[1]{0}', space=sflag, size = 0x4, scoped, tag = 'scoped memory for tpu_custom_call.1']
    #allocation10 [shape = 'u8[16384]{0}', space=vmem, size = 0x4000, scoped, tag = 'output window, operand 0, single buffered']
    %10 = vsyncpa [#allocation3], 0
    %11 = vsyncpa [#allocation6], 0
    %12 = vsyncpa [#allocation9], 0
    %13 = vsyncpa [#allocation4], 0
    // Predicated region
    $region2: #{tpu_custom_call.1} parent=1 // pred_check
      _
    $region3: #{tpu_custom_call.1} parent=1 // pred_check_branch
      %15 = sbr.rel (0) target = $region5
    $region4: #{tpu_custom_call.1} parent=1 // pred_region
      %s17 = ssub.s32 1024, 1024
      %18 = vsyncadd [#allocation3], %s17
      %s19 = sshll.u32 [#allocation2], 4
      %s20 = int_to_ptr.vmem [resolvable:$true] %s19
      %25 = dma.hbm_to_vmem [thread:$0]  %s0, 1024, %s20, [#allocation3], 512, 512, 32
    $region5: #{tpu_custom_call.1} parent=1 // pred_fallthru
      _
    // Predicated region
    $region6: #{tpu_custom_call.1} parent=1 // pred_check
      _
    $region7: #{tpu_custom_call.1} parent=1 // pred_check_branch
      %27 = sbr.rel (0) target = $region9
    $region8: #{tpu_custom_call.1} parent=1 // pred_region
      %s29 = ssub.s32 1024, 1024
      %30 = vsyncadd [#allocation6], %s29
      %s31 = sshll.u32 [#allocation5], 4
      %s32 = int_to_ptr.vmem [resolvable:$true] %s31
      %37 = dma.hbm_to_vmem [thread:$0]  %s1, 1024, %s32, [#allocation6], 512, 512, 32
    $region9: #{tpu_custom_call.1} parent=1 // pred_fallthru
      _
    // Predicated region
    $region10: #{tpu_custom_call.1} parent=1 // pred_check
      _
    $region11: #{tpu_custom_call.1} parent=1 // pred_check_branch
      %39 = sbr.rel (0) target = $region13
    $region12: #{tpu_custom_call.1} parent=1 // pred_region
      %s41 = ssub.s32 16384, 16384
      %42 = vsyncadd [#allocation6], %s41
      %s43 = sshll.u32 [#allocation7], 4
      %s44 = int_to_ptr.vmem [resolvable:$true] %s43
      %49 = dma.hbm_to_vmem [thread:$0]  %s2, 16384, %s44, [#allocation6], 128, 128, 8
    $region13: #{tpu_custom_call.1} parent=1 // pred_fallthru
      _
    // Predicated region
    $region14: #{tpu_custom_call.1} parent=1 // pred_check
      _
    $region15: #{tpu_custom_call.1} parent=1 // pred_check_branch
      %51 = sbr.rel (0) target = $region17
    $region16: #{tpu_custom_call.1} parent=1 // pred_region
      %s53 = ssub.s32 16384, 16384
      %54 = vsyncadd [#allocation9], %s53
      %s55 = sshll.u32 [#allocation8], 4
      %s56 = int_to_ptr.vmem [resolvable:$true] %s55
      %61 = dma.hbm_to_vmem [thread:$0]  %s3, 16384, %s56, [#allocation9], 128, 128, 8
    $region17: #{tpu_custom_call.1} parent=1 // pred_fallthru
      _
    // Predicated region
    $region18: #{tpu_custom_call.1} parent=1 // pred_check
      _
    $region19: #{tpu_custom_call.1} parent=1 // pred_check_branch
      %63 = sbr.rel (0) target = $region21
    $region20: #{tpu_custom_call.1} parent=1 // pred_region
      _
    $region21: #{tpu_custom_call.1} parent=1 // pred_fallthru
      _
    // Predicated region
    $region22: #{tpu_custom_call.1} parent=1 // pred_check
      _
    $region23: #{tpu_custom_call.1} parent=1 // pred_check_branch
      %65 = sbr.rel (0) target = $region25
    $region24: #{tpu_custom_call.1} parent=1 // pred_region
      %66 = dma.done [#allocation3], 1024
    $region25: #{tpu_custom_call.1} parent=1 // pred_fallthru
      _
    // Predicated region
    $region26: #{tpu_custom_call.1} parent=1 // pred_check
      _
    $region27: #{tpu_custom_call.1} parent=1 // pred_check_branch
      %68 = sbr.rel (0) target = $region29
    $region28: #{tpu_custom_call.1} parent=1 // pred_region
      %69 = dma.done [#allocation6], 1024
    $region29: #{tpu_custom_call.1} parent=1 // pred_fallthru
      _
    // Predicated region
    $region30: #{tpu_custom_call.1} parent=1 // pred_check
      _
    $region31: #{tpu_custom_call.1} parent=1 // pred_check_branch
      %71 = sbr.rel (0) target = $region33
    $region32: #{tpu_custom_call.1} parent=1 // pred_region
      %72 = dma.done [#allocation6], 16384
    $region33: #{tpu_custom_call.1} parent=1 // pred_fallthru
      _
    // Predicated region
    $region34: #{tpu_custom_call.1} parent=1 // pred_check
      _
    $region35: #{tpu_custom_call.1} parent=1 // pred_check_branch
      %74 = sbr.rel (0) target = $region37
    $region36: #{tpu_custom_call.1} parent=1 // pred_region
      %75 = dma.done [#allocation9], 16384
    $region37: #{tpu_custom_call.1} parent=1 // pred_fallthru
      _
    %v76 = vld [vmem:[#allocation2] sm:$0xff]
    %v77 = vld [vmem:[#allocation2 + $0x8] sm:$0xff]
    %v78 = vld [vmem:[#allocation2 + $0x10] sm:$0xff]
    %v79 = vld [vmem:[#allocation2 + $0x18] sm:$0xff]
    %v80 = vld [vmem:[#allocation2 + $0x20] sm:$0xff]
    %v81 = vld [vmem:[#allocation2 + $0x28] sm:$0xff]
    %v82 = vld [vmem:[#allocation2 + $0x30] sm:$0xff]
    %v83 = vld [vmem:[#allocation2 + $0x38] sm:$0xff]
    %v84 = vld [vmem:[#allocation7] sm:$0xff]
    %v85 = vld [vmem:[#allocation7 + $0x8] sm:$0xff]
    %v86 = vld [vmem:[#allocation7 + $0x10] sm:$0xff]
    %v87 = vld [vmem:[#allocation7 + $0x18] sm:$0xff]
    %v88 = vld [vmem:[#allocation7 + $0x20] sm:$0xff]
    %v89 = vld [vmem:[#allocation7 + $0x28] sm:$0xff]
    %v90 = vld [vmem:[#allocation7 + $0x30] sm:$0xff]
    %v91 = vld [vmem:[#allocation7 + $0x38] sm:$0xff]
    %v92 = vld [vmem:[#allocation7 + $0x40] sm:$0xff]
    %v93 = vld [vmem:[#allocation7 + $0x48] sm:$0xff]
    %v94 = vld [vmem:[#allocation7 + $0x50] sm:$0xff]
    %v95 = vld [vmem:[#allocation7 + $0x58] sm:$0xff]
    %v96 = vld [vmem:[#allocation7 + $0x60] sm:$0xff]
    %v97 = vld [vmem:[#allocation7 + $0x68] sm:$0xff]
    %v98 = vld [vmem:[#allocation7 + $0x70] sm:$0xff]
    %v99 = vld [vmem:[#allocation7 + $0x78] sm:$0xff]
    %v100 = vld [vmem:[#allocation7 + $0x80] sm:$0xff]
    %v101 = vld [vmem:[#allocation7 + $0x88] sm:$0xff]
    %v102 = vld [vmem:[#allocation7 + $0x90] sm:$0xff]
    %v103 = vld [vmem:[#allocation7 + $0x98] sm:$0xff]
    %v104 = vld [vmem:[#allocation7 + $0xa0] sm:$0xff]
    %v105 = vld [vmem:[#allocation7 + $0xa8] sm:$0xff]
    %v106 = vld [vmem:[#allocation7 + $0xb0] sm:$0xff]
    %v107 = vld [vmem:[#allocation7 + $0xb8] sm:$0xff]
    %v108 = vld [vmem:[#allocation7 + $0xc0] sm:$0xff]
    %v109 = vld [vmem:[#allocation7 + $0xc8] sm:$0xff]
    %v110 = vld [vmem:[#allocation7 + $0xd0] sm:$0xff]
    %v111 = vld [vmem:[#allocation7 + $0xd8] sm:$0xff]
    %v112 = vld [vmem:[#allocation7 + $0xe0] sm:$0xff]
    %v113 = vld [vmem:[#allocation7 + $0xe8] sm:$0xff]
    %v114 = vld [vmem:[#allocation7 + $0xf0] sm:$0xff]
    %v115 = vld [vmem:[#allocation7 + $0xf8] sm:$0xff]
    %v116 = vld [vmem:[#allocation7 + $0x100] sm:$0xff]
    %v117 = vld [vmem:[#allocation7 + $0x108] sm:$0xff]
    %v118 = vld [vmem:[#allocation7 + $0x110] sm:$0xff]
    %v119 = vld [vmem:[#allocation7 + $0x118] sm:$0xff]
    %v120 = vld [vmem:[#allocation7 + $0x120] sm:$0xff]
    %v121 = vld [vmem:[#allocation7 + $0x128] sm:$0xff]
    %v122 = vld [vmem:[#allocation7 + $0x130] sm:$0xff]
    %v123 = vld [vmem:[#allocation7 + $0x138] sm:$0xff]
    %v124 = vld [vmem:[#allocation7 + $0x140] sm:$0xff]
    %v125 = vld [vmem:[#allocation7 + $0x148] sm:$0xff]
    %v126 = vld [vmem:[#allocation7 + $0x150] sm:$0xff]
    %v127 = vld [vmem:[#allocation7 + $0x158] sm:$0xff]
    %v128 = vld [vmem:[#allocation7 + $0x160] sm:$0xff]
    %v129 = vld [vmem:[#allocation7 + $0x168] sm:$0xff]
    %v130 = vld [vmem:[#allocation7 + $0x170] sm:$0xff]
    %v131 = vld [vmem:[#allocation7 + $0x178] sm:$0xff]
    %v132 = vld [vmem:[#allocation7 + $0x180] sm:$0xff]
    %v133 = vld [vmem:[#allocation7 + $0x188] sm:$0xff]
    %v134 = vld [vmem:[#allocation7 + $0x190] sm:$0xff]
    %v135 = vld [vmem:[#allocation7 + $0x198] sm:$0xff]
    %v136 = vld [vmem:[#allocation7 + $0x1a0] sm:$0xff]
    %v137 = vld [vmem:[#allocation7 + $0x1a8] sm:$0xff]
    %v138 = vld [vmem:[#allocation7 + $0x1b0] sm:$0xff]
    %v139 = vld [vmem:[#allocation7 + $0x1b8] sm:$0xff]
    %v140 = vld [vmem:[#allocation7 + $0x1c0] sm:$0xff]
    %v141 = vld [vmem:[#allocation7 + $0x1c8] sm:$0xff]
    %v142 = vld [vmem:[#allocation7 + $0x1d0] sm:$0xff]
    %v143 = vld [vmem:[#allocation7 + $0x1d8] sm:$0xff]
    %v144 = vld [vmem:[#allocation7 + $0x1e0] sm:$0xff]
    %v145 = vld [vmem:[#allocation7 + $0x1e8] sm:$0xff]
    %v146 = vld [vmem:[#allocation7 + $0x1f0] sm:$0xff]
    %v147 = vld [vmem:[#allocation7 + $0x1f8] sm:$0xff]
    %v148 = vld [vmem:[#allocation7 + $0x200] sm:$0xff]
    %v149 = vld [vmem:[#allocation7 + $0x208] sm:$0xff]
    %v150 = vld [vmem:[#allocation7 + $0x210] sm:$0xff]
    %v151 = vld [vmem:[#allocation7 + $0x218] sm:$0xff]
    %v152 = vld [vmem:[#allocation7 + $0x220] sm:$0xff]
    %v153 = vld [vmem:[#allocation7 + $0x228] sm:$0xff]
    %v154 = vld [vmem:[#allocation7 + $0x230] sm:$0xff]
    %v155 = vld [vmem:[#allocation7 + $0x238] sm:$0xff]
    %v156 = vld [vmem:[#allocation7 + $0x240] sm:$0xff]
    %v157 = vld [vmem:[#allocation7 + $0x248] sm:$0xff]
    %v158 = vld [vmem:[#allocation7 + $0x250] sm:$0xff]
    %v159 = vld [vmem:[#allocation7 + $0x258] sm:$0xff]
    %v160 = vld [vmem:[#allocation7 + $0x260] sm:$0xff]
    %v161 = vld [vmem:[#allocation7 + $0x268] sm:$0xff]
    %v162 = vld [vmem:[#allocation7 + $0x270] sm:$0xff]
    %v163 = vld [vmem:[#allocation7 + $0x278] sm:$0xff]
    %v164 = vld [vmem:[#allocation7 + $0x280] sm:$0xff]
    %v165 = vld [vmem:[#allocation7 + $0x288] sm:$0xff]
    %v166 = vld [vmem:[#allocation7 + $0x290] sm:$0xff]
    %v167 = vld [vmem:[#allocation7 + $0x298] sm:$0xff]
    %v168 = vld [vmem:[#allocation7 + $0x2a0] sm:$0xff]
    %v169 = vld [vmem:[#allocation7 + $0x2a8] sm:$0xff]
    %v170 = vld [vmem:[#allocation7 + $0x2b0] sm:$0xff]
    %v171 = vld [vmem:[#allocation7 + $0x2b8] sm:$0xff]
    %v172 = vld [vmem:[#allocation7 + $0x2c0] sm:$0xff]
    %v173 = vld [vmem:[#allocation7 + $0x2c8] sm:$0xff]
    %v174 = vld [vmem:[#allocation7 + $0x2d0] sm:$0xff]
    %v175 = vld [vmem:[#allocation7 + $0x2d8] sm:$0xff]
    %v176 = vld [vmem:[#allocation7 + $0x2e0] sm:$0xff]
    %v177 = vld [vmem:[#allocation7 + $0x2e8] sm:$0xff]
    %v178 = vld [vmem:[#allocation7 + $0x2f0] sm:$0xff]
    %v179 = vld [vmem:[#allocation7 + $0x2f8] sm:$0xff]
    %v180 = vld [vmem:[#allocation7 + $0x300] sm:$0xff]
    %v181 = vld [vmem:[#allocation7 + $0x308] sm:$0xff]
    %v182 = vld [vmem:[#allocation7 + $0x310] sm:$0xff]
    %v183 = vld [vmem:[#allocation7 + $0x318] sm:$0xff]
    %v184 = vld [vmem:[#allocation7 + $0x320] sm:$0xff]
    %v185 = vld [vmem:[#allocation7 + $0x328] sm:$0xff]
    %v186 = vld [vmem:[#allocation7 + $0x330] sm:$0xff]
    %v187 = vld [vmem:[#allocation7 + $0x338] sm:$0xff]
    %v188 = vld [vmem:[#allocation7 + $0x340] sm:$0xff]
    %v189 = vld [vmem:[#allocation7 + $0x348] sm:$0xff]
    %v190 = vld [vmem:[#allocation7 + $0x350] sm:$0xff]
    %v191 = vld [vmem:[#allocation7 + $0x358] sm:$0xff]
    %v192 = vld [vmem:[#allocation7 + $0x360] sm:$0xff]
    %v193 = vld [vmem:[#allocation7 + $0x368] sm:$0xff]
    %v194 = vld [vmem:[#allocation7 + $0x370] sm:$0xff]
    %v195 = vld [vmem:[#allocation7 + $0x378] sm:$0xff]
    %v196 = vld [vmem:[#allocation7 + $0x380] sm:$0xff]
    %v197 = vld [vmem:[#allocation7 + $0x388] sm:$0xff]
    %v198 = vld [vmem:[#allocation7 + $0x390] sm:$0xff]
    %v199 = vld [vmem:[#allocation7 + $0x398] sm:$0xff]
    %v200 = vld [vmem:[#allocation7 + $0x3a0] sm:$0xff]
    %v201 = vld [vmem:[#allocation7 + $0x3a8] sm:$0xff]
    %v202 = vld [vmem:[#allocation7 + $0x3b0] sm:$0xff]
    %v203 = vld [vmem:[#allocation7 + $0x3b8] sm:$0xff]
    %v204 = vld [vmem:[#allocation7 + $0x3c0] sm:$0xff]
    %v205 = vld [vmem:[#allocation7 + $0x3c8] sm:$0xff]
    %v206 = vld [vmem:[#allocation7 + $0x3d0] sm:$0xff]
    %v207 = vld [vmem:[#allocation7 + $0x3d8] sm:$0xff]
    %v208 = vld [vmem:[#allocation7 + $0x3e0] sm:$0xff]
    %v209 = vld [vmem:[#allocation7 + $0x3e8] sm:$0xff]
    %v210 = vld [vmem:[#allocation7 + $0x3f0] sm:$0xff]
    %v211 = vld [vmem:[#allocation7 + $0x3f8] sm:$0xff]
    %v212 = vld [vmem:[#allocation5] sm:$0xff]
    %v213 = vld [vmem:[#allocation5 + $0x8] sm:$0xff]
    %v214 = vld [vmem:[#allocation5 + $0x10] sm:$0xff]
    %v215 = vld [vmem:[#allocation5 + $0x18] sm:$0xff]
    %v216 = vld [vmem:[#allocation5 + $0x20] sm:$0xff]
    %v217 = vld [vmem:[#allocation5 + $0x28] sm:$0xff]
    %v218 = vld [vmem:[#allocation5 + $0x30] sm:$0xff]
    %v219 = vld [vmem:[#allocation5 + $0x38] sm:$0xff]
    %v220 = vld [vmem:[#allocation8] sm:$0xff]
    %v221 = vld [vmem:[#allocation8 + $0x8] sm:$0xff]
    %v222 = vld [vmem:[#allocation8 + $0x10] sm:$0xff]
    %v223 = vld [vmem:[#allocation8 + $0x18] sm:$0xff]
    %v224 = vld [vmem:[#allocation8 + $0x20] sm:$0xff]
    %v225 = vld [vmem:[#allocation8 + $0x28] sm:$0xff]
    %v226 = vld [vmem:[#allocation8 + $0x30] sm:$0xff]
    %v227 = vld [vmem:[#allocation8 + $0x38] sm:$0xff]
    %v228 = vld [vmem:[#allocation8 + $0x40] sm:$0xff]
    %v229 = vld [vmem:[#allocation8 + $0x48] sm:$0xff]
    %v230 = vld [vmem:[#allocation8 + $0x50] sm:$0xff]
    %v231 = vld [vmem:[#allocation8 + $0x58] sm:$0xff]
    %v232 = vld [vmem:[#allocation8 + $0x60] sm:$0xff]
    %v233 = vld [vmem:[#allocation8 + $0x68] sm:$0xff]
    %v234 = vld [vmem:[#allocation8 + $0x70] sm:$0xff]
    %v235 = vld [vmem:[#allocation8 + $0x78] sm:$0xff]
    %v236 = vld [vmem:[#allocation8 + $0x80] sm:$0xff]
    %v237 = vld [vmem:[#allocation8 + $0x88] sm:$0xff]
    %v238 = vld [vmem:[#allocation8 + $0x90] sm:$0xff]
    %v239 = vld [vmem:[#allocation8 + $0x98] sm:$0xff]
    %v240 = vld [vmem:[#allocation8 + $0xa0] sm:$0xff]
    %v241 = vld [vmem:[#allocation8 + $0xa8] sm:$0xff]
    %v242 = vld [vmem:[#allocation8 + $0xb0] sm:$0xff]
    %v243 = vld [vmem:[#allocation8 + $0xb8] sm:$0xff]
    %v244 = vld [vmem:[#allocation8 + $0xc0] sm:$0xff]
    %v245 = vld [vmem:[#allocation8 + $0xc8] sm:$0xff]
    %v246 = vld [vmem:[#allocation8 + $0xd0] sm:$0xff]
    %v247 = vld [vmem:[#allocation8 + $0xd8] sm:$0xff]
    %v248 = vld [vmem:[#allocation8 + $0xe0] sm:$0xff]
    %v249 = vld [vmem:[#allocation8 + $0xe8] sm:$0xff]
    %v250 = vld [vmem:[#allocation8 + $0xf0] sm:$0xff]
    %v251 = vld [vmem:[#allocation8 + $0xf8] sm:$0xff]
    %v252 = vld [vmem:[#allocation8 + $0x100] sm:$0xff]
    %v253 = vld [vmem:[#allocation8 + $0x108] sm:$0xff]
    %v254 = vld [vmem:[#allocation8 + $0x110] sm:$0xff]
    %v255 = vld [vmem:[#allocation8 + $0x118] sm:$0xff]
    %v256 = vld [vmem:[#allocation8 + $0x120] sm:$0xff]
    %v257 = vld [vmem:[#allocation8 + $0x128] sm:$0xff]
    %v258 = vld [vmem:[#allocation8 + $0x130] sm:$0xff]
    %v259 = vld [vmem:[#allocation8 + $0x138] sm:$0xff]
    %v260 = vld [vmem:[#allocation8 + $0x140] sm:$0xff]
    %v261 = vld [vmem:[#allocation8 + $0x148] sm:$0xff]
    %v262 = vld [vmem:[#allocation8 + $0x150] sm:$0xff]
    %v263 = vld [vmem:[#allocation8 + $0x158] sm:$0xff]
    %v264 = vld [vmem:[#allocation8 + $0x160] sm:$0xff]
    %v265 = vld [vmem:[#allocation8 + $0x168] sm:$0xff]
    %v266 = vld [vmem:[#allocation8 + $0x170] sm:$0xff]
    %v267 = vld [vmem:[#allocation8 + $0x178] sm:$0xff]
    %v268 = vld [vmem:[#allocation8 + $0x180] sm:$0xff]
    %v269 = vld [vmem:[#allocation8 + $0x188] sm:$0xff]
    %v270 = vld [vmem:[#allocation8 + $0x190] sm:$0xff]
    %v271 = vld [vmem:[#allocation8 + $0x198] sm:$0xff]
    %v272 = vld [vmem:[#allocation8 + $0x1a0] sm:$0xff]
    %v273 = vld [vmem:[#allocation8 + $0x1a8] sm:$0xff]
    %v274 = vld [vmem:[#allocation8 + $0x1b0] sm:$0xff]
    %v275 = vld [vmem:[#allocation8 + $0x1b8] sm:$0xff]
    %v276 = vld [vmem:[#allocation8 + $0x1c0] sm:$0xff]
    %v277 = vld [vmem:[#allocation8 + $0x1c8] sm:$0xff]
    %v278 = vld [vmem:[#allocation8 + $0x1d0] sm:$0xff]
    %v279 = vld [vmem:[#allocation8 + $0x1d8] sm:$0xff]
    %v280 = vld [vmem:[#allocation8 + $0x1e0] sm:$0xff]
    %v281 = vld [vmem:[#allocation8 + $0x1e8] sm:$0xff]
    %v282 = vld [vmem:[#allocation8 + $0x1f0] sm:$0xff]
    %v283 = vld [vmem:[#allocation8 + $0x1f8] sm:$0xff]
    %v284 = vld [vmem:[#allocation8 + $0x200] sm:$0xff]
    %v285 = vld [vmem:[#allocation8 + $0x208] sm:$0xff]
    %v286 = vld [vmem:[#allocation8 + $0x210] sm:$0xff]
    %v287 = vld [vmem:[#allocation8 + $0x218] sm:$0xff]
    %v288 = vld [vmem:[#allocation8 + $0x220] sm:$0xff]
    %v289 = vld [vmem:[#allocation8 + $0x228] sm:$0xff]
    %v290 = vld [vmem:[#allocation8 + $0x230] sm:$0xff]
    %v291 = vld [vmem:[#allocation8 + $0x238] sm:$0xff]
    %v292 = vld [vmem:[#allocation8 + $0x240] sm:$0xff]
    %v293 = vld [vmem:[#allocation8 + $0x248] sm:$0xff]
    %v294 = vld [vmem:[#allocation8 + $0x250] sm:$0xff]
    %v295 = vld [vmem:[#allocation8 + $0x258] sm:$0xff]
    %v296 = vld [vmem:[#allocation8 + $0x260] sm:$0xff]
    %v297 = vld [vmem:[#allocation8 + $0x268] sm:$0xff]
    %v298 = vld [vmem:[#allocation8 + $0x270] sm:$0xff]
    %v299 = vld [vmem:[#allocation8 + $0x278] sm:$0xff]
    %v300 = vld [vmem:[#allocation8 + $0x280] sm:$0xff]
    %v301 = vld [vmem:[#allocation8 + $0x288] sm:$0xff]
    %v302 = vld [vmem:[#allocation8 + $0x290] sm:$0xff]
    %v303 = vld [vmem:[#allocation8 + $0x298] sm:$0xff]
    %v304 = vld [vmem:[#allocation8 + $0x2a0] sm:$0xff]
    %v305 = vld [vmem:[#allocation8 + $0x2a8] sm:$0xff]
    %v306 = vld [vmem:[#allocation8 + $0x2b0] sm:$0xff]
    %v307 = vld [vmem:[#allocation8 + $0x2b8] sm:$0xff]
    %v308 = vld [vmem:[#allocation8 + $0x2c0] sm:$0xff]
    %v309 = vld [vmem:[#allocation8 + $0x2c8] sm:$0xff]
    %v310 = vld [vmem:[#allocation8 + $0x2d0] sm:$0xff]
    %v311 = vld [vmem:[#allocation8 + $0x2d8] sm:$0xff]
    %v312 = vld [vmem:[#allocation8 + $0x2e0] sm:$0xff]
    %v313 = vld [vmem:[#allocation8 + $0x2e8] sm:$0xff]
    %v314 = vld [vmem:[#allocation8 + $0x2f0] sm:$0xff]
    %v315 = vld [vmem:[#allocation8 + $0x2f8] sm:$0xff]
    %v316 = vld [vmem:[#allocation8 + $0x300] sm:$0xff]
    %v317 = vld [vmem:[#allocation8 + $0x308] sm:$0xff]
    %v318 = vld [vmem:[#allocation8 + $0x310] sm:$0xff]
    %v319 = vld [vmem:[#allocation8 + $0x318] sm:$0xff]
    %v320 = vld [vmem:[#allocation8 + $0x320] sm:$0xff]
    %v321 = vld [vmem:[#allocation8 + $0x328] sm:$0xff]
    %v322 = vld [vmem:[#allocation8 + $0x330] sm:$0xff]
    %v323 = vld [vmem:[#allocation8 + $0x338] sm:$0xff]
    %v324 = vld [vmem:[#allocation8 + $0x340] sm:$0xff]
    %v325 = vld [vmem:[#allocation8 + $0x348] sm:$0xff]
    %v326 = vld [vmem:[#allocation8 + $0x350] sm:$0xff]
    %v327 = vld [vmem:[#allocation8 + $0x358] sm:$0xff]
    %v328 = vld [vmem:[#allocation8 + $0x360] sm:$0xff]
    %v329 = vld [vmem:[#allocation8 + $0x368] sm:$0xff]
    %v330 = vld [vmem:[#allocation8 + $0x370] sm:$0xff]
    %v331 = vld [vmem:[#allocation8 + $0x378] sm:$0xff]
    %v332 = vld [vmem:[#allocation8 + $0x380] sm:$0xff]
    %v333 = vld [vmem:[#allocation8 + $0x388] sm:$0xff]
    %v334 = vld [vmem:[#allocation8 + $0x390] sm:$0xff]
    %v335 = vld [vmem:[#allocation8 + $0x398] sm:$0xff]
    %v336 = vld [vmem:[#allocation8 + $0x3a0] sm:$0xff]
    %v337 = vld [vmem:[#allocation8 + $0x3a8] sm:$0xff]
    %v338 = vld [vmem:[#allocation8 + $0x3b0] sm:$0xff]
    %v339 = vld [vmem:[#allocation8 + $0x3b8] sm:$0xff]
    %v340 = vld [vmem:[#allocation8 + $0x3c0] sm:$0xff]
    %v341 = vld [vmem:[#allocation8 + $0x3c8] sm:$0xff]
    %v342 = vld [vmem:[#allocation8 + $0x3d0] sm:$0xff]
    %v343 = vld [vmem:[#allocation8 + $0x3d8] sm:$0xff]
    %v344 = vld [vmem:[#allocation8 + $0x3e0] sm:$0xff]
    %v345 = vld [vmem:[#allocation8 + $0x3e8] sm:$0xff]
    %v346 = vld [vmem:[#allocation8 + $0x3f0] sm:$0xff]
    %v347 = vld [vmem:[#allocation8 + $0x3f8] sm:$0xff]
    %v356 = vunpack.c.l.b16 %v212
    %v357 = vunpack.c.h.b16 %v212
    %v358 = vunpack.c.l.b16 %v213
    %v359 = vunpack.c.h.b16 %v213
    %v360 = vunpack.c.l.b16 %v214
    %v361 = vunpack.c.h.b16 %v214
    %v362 = vunpack.c.l.b16 %v215
    %v363 = vunpack.c.h.b16 %v215
    %v364 = vunpack.c.l.b16 %v216
    %v365 = vunpack.c.h.b16 %v216
    %v366 = vunpack.c.l.b16 %v217
    %v367 = vunpack.c.h.b16 %v217
    %v368 = vunpack.c.l.b16 %v218
    %v369 = vunpack.c.h.b16 %v218
    %v370 = vunpack.c.l.b16 %v219
    %v371 = vunpack.c.h.b16 %v219
    %v372 = vpack.c.b16 %v364, %v356
    %v373 = vpack.c.b16 %v365, %v357
    %v374 = vpack.c.b16 %v366, %v358
    %v375 = vpack.c.b16 %v367, %v359
    %v376 = vpack.c.b16 %v368, %v360
    %v377 = vpack.c.b16 %v369, %v361
    %v378 = vpack.c.b16 %v370, %v362
    %v379 = vpack.c.b16 %v371, %v363
    %v516 = vunpack.c.l.b16 %v220
    %v517 = vunpack.c.h.b16 %v220
    %v518 = vunpack.c.l.b16 %v221
    %v519 = vunpack.c.h.b16 %v221
    %v520 = vunpack.c.l.b16 %v222
    %v521 = vunpack.c.h.b16 %v222
    %v522 = vunpack.c.l.b16 %v223
    %v523 = vunpack.c.h.b16 %v223
    %v524 = vunpack.c.l.b16 %v224
    %v525 = vunpack.c.h.b16 %v224
    %v526 = vunpack.c.l.b16 %v225
    %v527 = vunpack.c.h.b16 %v225
    %v528 = vunpack.c.l.b16 %v226
    %v529 = vunpack.c.h.b16 %v226
    %v530 = vunpack.c.l.b16 %v227
    %v531 = vunpack.c.h.b16 %v227
    %v532 = vunpack.c.l.b16 %v228
    %v533 = vunpack.c.h.b16 %v228
    %v534 = vunpack.c.l.b16 %v229
    %v535 = vunpack.c.h.b16 %v229
    %v536 = vunpack.c.l.b16 %v230
    %v537 = vunpack.c.h.b16 %v230
    %v538 = vunpack.c.l.b16 %v231
    %v539 = vunpack.c.h.b16 %v231
    %v540 = vunpack.c.l.b16 %v232
    %v541 = vunpack.c.h.b16 %v232
    %v542 = vunpack.c.l.b16 %v233
    %v543 = vunpack.c.h.b16 %v233
    %v544 = vunpack.c.l.b16 %v234
    %v545 = vunpack.c.h.b16 %v234
    %v546 = vunpack.c.l.b16 %v235
    %v547 = vunpack.c.h.b16 %v235
    %v548 = vunpack.c.l.b16 %v236
    %v549 = vunpack.c.h.b16 %v236
    %v550 = vunpack.c.l.b16 %v237
    %v551 = vunpack.c.h.b16 %v237
    %v552 = vunpack.c.l.b16 %v238
    %v553 = vunpack.c.h.b16 %v238
    %v554 = vunpack.c.l.b16 %v239
    %v555 = vunpack.c.h.b16 %v239
    %v556 = vunpack.c.l.b16 %v240
    %v557 = vunpack.c.h.b16 %v240
    %v558 = vunpack.c.l.b16 %v241
    %v559 = vunpack.c.h.b16 %v241
    %v560 = vunpack.c.l.b16 %v242
    %v561 = vunpack.c.h.b16 %v242
    %v562 = vunpack.c.l.b16 %v243
    %v563 = vunpack.c.h.b16 %v243
    %v564 = vunpack.c.l.b16 %v244
    %v565 = vunpack.c.h.b16 %v244
    %v566 = vunpack.c.l.b16 %v245
    %v567 = vunpack.c.h.b16 %v245
    %v568 = vunpack.c.l.b16 %v246
    %v569 = vunpack.c.h.b16 %v246
    %v570 = vunpack.c.l.b16 %v247
    %v571 = vunpack.c.h.b16 %v247
    %v572 = vunpack.c.l.b16 %v248
    %v573 = vunpack.c.h.b16 %v248
    %v574 = vunpack.c.l.b16 %v249
    %v575 = vunpack.c.h.b16 %v249
    %v576 = vunpack.c.l.b16 %v250
    %v577 = vunpack.c.h.b16 %v250
    %v578 = vunpack.c.l.b16 %v251
    %v579 = vunpack.c.h.b16 %v251
    %v580 = vunpack.c.l.b16 %v252
    %v581 = vunpack.c.h.b16 %v252
    %v582 = vunpack.c.l.b16 %v253
    %v583 = vunpack.c.h.b16 %v253
    %v584 = vunpack.c.l.b16 %v254
    %v585 = vunpack.c.h.b16 %v254
    %v586 = vunpack.c.l.b16 %v255
    %v587 = vunpack.c.h.b16 %v255
    %v588 = vunpack.c.l.b16 %v256
    %v589 = vunpack.c.h.b16 %v256
    %v590 = vunpack.c.l.b16 %v257
    %v591 = vunpack.c.h.b16 %v257
    %v592 = vunpack.c.l.b16 %v258
    %v593 = vunpack.c.h.b16 %v258
    %v594 = vunpack.c.l.b16 %v259
    %v595 = vunpack.c.h.b16 %v259
    %v596 = vunpack.c.l.b16 %v260
    %v597 = vunpack.c.h.b16 %v260
    %v598 = vunpack.c.l.b16 %v261
    %v599 = vunpack.c.h.b16 %v261
    %v600 = vunpack.c.l.b16 %v262
    %v601 = vunpack.c.h.b16 %v262
    %v602 = vunpack.c.l.b16 %v263
    %v603 = vunpack.c.h.b16 %v263
    %v604 = vunpack.c.l.b16 %v264
    %v605 = vunpack.c.h.b16 %v264
    %v606 = vunpack.c.l.b16 %v265
    %v607 = vunpack.c.h.b16 %v265
    %v608 = vunpack.c.l.b16 %v266
    %v609 = vunpack.c.h.b16 %v266
    %v610 = vunpack.c.l.b16 %v267
    %v611 = vunpack.c.h.b16 %v267
    %v612 = vunpack.c.l.b16 %v268
    %v613 = vunpack.c.h.b16 %v268
    %v614 = vunpack.c.l.b16 %v269
    %v615 = vunpack.c.h.b16 %v269
    %v616 = vunpack.c.l.b16 %v270
    %v617 = vunpack.c.h.b16 %v270
    %v618 = vunpack.c.l.b16 %v271
    %v619 = vunpack.c.h.b16 %v271
    %v620 = vunpack.c.l.b16 %v272
    %v621 = vunpack.c.h.b16 %v272
    %v622 = vunpack.c.l.b16 %v273
    %v623 = vunpack.c.h.b16 %v273
    %v624 = vunpack.c.l.b16 %v274
    %v625 = vunpack.c.h.b16 %v274
    %v626 = vunpack.c.l.b16 %v275
    %v627 = vunpack.c.h.b16 %v275
    %v628 = vunpack.c.l.b16 %v276
    %v629 = vunpack.c.h.b16 %v276
    %v630 = vunpack.c.l.b16 %v277
    %v631 = vunpack.c.h.b16 %v277
    %v632 = vunpack.c.l.b16 %v278
    %v633 = vunpack.c.h.b16 %v278
    %v634 = vunpack.c.l.b16 %v279
    %v635 = vunpack.c.h.b16 %v279
    %v636 = vunpack.c.l.b16 %v280
    %v637 = vunpack.c.h.b16 %v280
    %v638 = vunpack.c.l.b16 %v281
    %v639 = vunpack.c.h.b16 %v281
    %v640 = vunpack.c.l.b16 %v282
    %v641 = vunpack.c.h.b16 %v282
    %v642 = vunpack.c.l.b16 %v283
    %v643 = vunpack.c.h.b16 %v283
    %v644 = vunpack.c.l.b16 %v284
    %v645 = vunpack.c.h.b16 %v284
    %v646 = vunpack.c.l.b16 %v285
    %v647 = vunpack.c.h.b16 %v285
    %v648 = vunpack.c.l.b16 %v286
    %v649 = vunpack.c.h.b16 %v286
    %v650 = vunpack.c.l.b16 %v287
    %v651 = vunpack.c.h.b16 %v287
    %v652 = vunpack.c.l.b16 %v288
    %v653 = vunpack.c.h.b16 %v288
    %v654 = vunpack.c.l.b16 %v289
    %v655 = vunpack.c.h.b16 %v289
    %v656 = vunpack.c.l.b16 %v290
    %v657 = vunpack.c.h.b16 %v290
    %v658 = vunpack.c.l.b16 %v291
    %v659 = vunpack.c.h.b16 %v291
    %v660 = vunpack.c.l.b16 %v292
    %v661 = vunpack.c.h.b16 %v292
    %v662 = vunpack.c.l.b16 %v293
    %v663 = vunpack.c.h.b16 %v293
    %v664 = vunpack.c.l.b16 %v294
    %v665 = vunpack.c.h.b16 %v294
    %v666 = vunpack.c.l.b16 %v295
    %v667 = vunpack.c.h.b16 %v295
    %v668 = vunpack.c.l.b16 %v296
    %v669 = vunpack.c.h.b16 %v296
    %v670 = vunpack.c.l.b16 %v297
    %v671 = vunpack.c.h.b16 %v297
    %v672 = vunpack.c.l.b16 %v298
    %v673 = vunpack.c.h.b16 %v298
    %v674 = vunpack.c.l.b16 %v299
    %v675 = vunpack.c.h.b16 %v299
    %v676 = vunpack.c.l.b16 %v300
    %v677 = vunpack.c.h.b16 %v300
    %v678 = vunpack.c.l.b16 %v301
    %v679 = vunpack.c.h.b16 %v301
    %v680 = vunpack.c.l.b16 %v302
    %v681 = vunpack.c.h.b16 %v302
    %v682 = vunpack.c.l.b16 %v303
    %v683 = vunpack.c.h.b16 %v303
    %v684 = vunpack.c.l.b16 %v304
    %v685 = vunpack.c.h.b16 %v304
    %v686 = vunpack.c.l.b16 %v305
    %v687 = vunpack.c.h.b16 %v305
    %v688 = vunpack.c.l.b16 %v306
    %v689 = vunpack.c.h.b16 %v306
    %v690 = vunpack.c.l.b16 %v307
    %v691 = vunpack.c.h.b16 %v307
    %v692 = vunpack.c.l.b16 %v308
    %v693 = vunpack.c.h.b16 %v308
    %v694 = vunpack.c.l.b16 %v309
    %v695 = vunpack.c.h.b16 %v309
    %v696 = vunpack.c.l.b16 %v310
    %v697 = vunpack.c.h.b16 %v310
    %v698 = vunpack.c.l.b16 %v311
    %v699 = vunpack.c.h.b16 %v311
    %v700 = vunpack.c.l.b16 %v312
    %v701 = vunpack.c.h.b16 %v312
    %v702 = vunpack.c.l.b16 %v313
    %v703 = vunpack.c.h.b16 %v313
    %v704 = vunpack.c.l.b16 %v314
    %v705 = vunpack.c.h.b16 %v314
    %v706 = vunpack.c.l.b16 %v315
    %v707 = vunpack.c.h.b16 %v315
    %v708 = vunpack.c.l.b16 %v316
    %v709 = vunpack.c.h.b16 %v316
    %v710 = vunpack.c.l.b16 %v317
    %v711 = vunpack.c.h.b16 %v317
    %v712 = vunpack.c.l.b16 %v318
    %v713 = vunpack.c.h.b16 %v318
    %v714 = vunpack.c.l.b16 %v319
    %v715 = vunpack.c.h.b16 %v319
    %v716 = vunpack.c.l.b16 %v320
    %v717 = vunpack.c.h.b16 %v320
    %v718 = vunpack.c.l.b16 %v321
    %v719 = vunpack.c.h.b16 %v321
    %v720 = vunpack.c.l.b16 %v322
    %v721 = vunpack.c.h.b16 %v322
    %v722 = vunpack.c.l.b16 %v323
    %v723 = vunpack.c.h.b16 %v323
    %v724 = vunpack.c.l.b16 %v324
    %v725 = vunpack.c.h.b16 %v324
    %v726 = vunpack.c.l.b16 %v325
    %v727 = vunpack.c.h.b16 %v325
    %v728 = vunpack.c.l.b16 %v326
    %v729 = vunpack.c.h.b16 %v326
    %v730 = vunpack.c.l.b16 %v327
    %v731 = vunpack.c.h.b16 %v327
    %v732 = vunpack.c.l.b16 %v328
    %v733 = vunpack.c.h.b16 %v328
    %v734 = vunpack.c.l.b16 %v329
    %v735 = vunpack.c.h.b16 %v329
    %v736 = vunpack.c.l.b16 %v330
    %v737 = vunpack.c.h.b16 %v330
    %v738 = vunpack.c.l.b16 %v331
    %v739 = vunpack.c.h.b16 %v331
    %v740 = vunpack.c.l.b16 %v332
    %v741 = vunpack.c.h.b16 %v332
    %v742 = vunpack.c.l.b16 %v333
    %v743 = vunpack.c.h.b16 %v333
    %v744 = vunpack.c.l.b16 %v334
    %v745 = vunpack.c.h.b16 %v334
    %v746 = vunpack.c.l.b16 %v335
    %v747 = vunpack.c.h.b16 %v335
    %v748 = vunpack.c.l.b16 %v336
    %v749 = vunpack.c.h.b16 %v336
    %v750 = vunpack.c.l.b16 %v337
    %v751 = vunpack.c.h.b16 %v337
    %v752 = vunpack.c.l.b16 %v338
    %v753 = vunpack.c.h.b16 %v338
    %v754 = vunpack.c.l.b16 %v339
    %v755 = vunpack.c.h.b16 %v339
    %v756 = vunpack.c.l.b16 %v340
    %v757 = vunpack.c.h.b16 %v340
    %v758 = vunpack.c.l.b16 %v341
    %v759 = vunpack.c.h.b16 %v341
    %v760 = vunpack.c.l.b16 %v342
    %v761 = vunpack.c.h.b16 %v342
    %v762 = vunpack.c.l.b16 %v343
    %v763 = vunpack.c.h.b16 %v343
    %v764 = vunpack.c.l.b16 %v344
    %v765 = vunpack.c.h.b16 %v344
    %v766 = vunpack.c.l.b16 %v345
    %v767 = vunpack.c.h.b16 %v345
    %v768 = vunpack.c.l.b16 %v346
    %v769 = vunpack.c.h.b16 %v346
    %v770 = vunpack.c.l.b16 %v347
    %v771 = vunpack.c.h.b16 %v347
    %v772 = vpack.c.b16 %v518, %v516
    %v773 = vpack.c.b16 %v519, %v517
    %v774 = vpack.c.b16 %v522, %v520
    %v775 = vpack.c.b16 %v523, %v521
    %v776 = vpack.c.b16 %v526, %v524
    %v777 = vpack.c.b16 %v527, %v525
    %v778 = vpack.c.b16 %v530, %v528
    %v779 = vpack.c.b16 %v531, %v529
    %v780 = vpack.c.b16 %v534, %v532
    %v781 = vpack.c.b16 %v535, %v533
    %v782 = vpack.c.b16 %v538, %v536
    %v783 = vpack.c.b16 %v539, %v537
    %v784 = vpack.c.b16 %v542, %v540
    %v785 = vpack.c.b16 %v543, %v541
    %v786 = vpack.c.b16 %v546, %v544
    %v787 = vpack.c.b16 %v547, %v545
    %v788 = vpack.c.b16 %v550, %v548
    %v789 = vpack.c.b16 %v551, %v549
    %v790 = vpack.c.b16 %v554, %v552
    %v791 = vpack.c.b16 %v555, %v553
    %v792 = vpack.c.b16 %v558, %v556
    %v793 = vpack.c.b16 %v559, %v557
    %v794 = vpack.c.b16 %v562, %v560
    %v795 = vpack.c.b16 %v563, %v561
    %v796 = vpack.c.b16 %v566, %v564
    %v797 = vpack.c.b16 %v567, %v565
    %v798 = vpack.c.b16 %v570, %v568
    %v799 = vpack.c.b16 %v571, %v569
    %v800 = vpack.c.b16 %v574, %v572
    %v801 = vpack.c.b16 %v575, %v573
    %v802 = vpack.c.b16 %v578, %v576
    %v803 = vpack.c.b16 %v579, %v577
    %v804 = vpack.c.b16 %v582, %v580
    %v805 = vpack.c.b16 %v583, %v581
    %v806 = vpack.c.b16 %v586, %v584
    %v807 = vpack.c.b16 %v587, %v585
    %v808 = vpack.c.b16 %v590, %v588
    %v809 = vpack.c.b16 %v591, %v589
    %v810 = vpack.c.b16 %v594, %v592
    %v811 = vpack.c.b16 %v595, %v593
    %v812 = vpack.c.b16 %v598, %v596
    %v813 = vpack.c.b16 %v599, %v597
    %v814 = vpack.c.b16 %v602, %v600
    %v815 = vpack.c.b16 %v603, %v601
    %v816 = vpack.c.b16 %v606, %v604
    %v817 = vpack.c.b16 %v607, %v605
    %v818 = vpack.c.b16 %v610, %v608
    %v819 = vpack.c.b16 %v611, %v609
    %v820 = vpack.c.b16 %v614, %v612
    %v821 = vpack.c.b16 %v615, %v613
    %v822 = vpack.c.b16 %v618, %v616
    %v823 = vpack.c.b16 %v619, %v617
    %v824 = vpack.c.b16 %v622, %v620
    %v825 = vpack.c.b16 %v623, %v621
    %v826 = vpack.c.b16 %v626, %v624
    %v827 = vpack.c.b16 %v627, %v625
    %v828 = vpack.c.b16 %v630, %v628
    %v829 = vpack.c.b16 %v631, %v629
    %v830 = vpack.c.b16 %v634, %v632
    %v831 = vpack.c.b16 %v635, %v633
    %v832 = vpack.c.b16 %v638, %v636
    %v833 = vpack.c.b16 %v639, %v637
    %v834 = vpack.c.b16 %v642, %v640
    %v835 = vpack.c.b16 %v643, %v641
    %v836 = vpack.c.b16 %v646, %v644
    %v837 = vpack.c.b16 %v647, %v645
    %v838 = vpack.c.b16 %v650, %v648
    %v839 = vpack.c.b16 %v651, %v649
    %v840 = vpack.c.b16 %v654, %v652
    %v841 = vpack.c.b16 %v655, %v653
    %v842 = vpack.c.b16 %v658, %v656
    %v843 = vpack.c.b16 %v659, %v657
    %v844 = vpack.c.b16 %v662, %v660
    %v845 = vpack.c.b16 %v663, %v661
    %v846 = vpack.c.b16 %v666, %v664
    %v847 = vpack.c.b16 %v667, %v665
    %v848 = vpack.c.b16 %v670, %v668
    %v849 = vpack.c.b16 %v671, %v669
    %v850 = vpack.c.b16 %v674, %v672
    %v851 = vpack.c.b16 %v675, %v673
    %v852 = vpack.c.b16 %v678, %v676
    %v853 = vpack.c.b16 %v679, %v677
    %v854 = vpack.c.b16 %v682, %v680
    %v855 = vpack.c.b16 %v683, %v681
    %v856 = vpack.c.b16 %v686, %v684
    %v857 = vpack.c.b16 %v687, %v685
    %v858 = vpack.c.b16 %v690, %v688
    %v859 = vpack.c.b16 %v691, %v689
    %v860 = vpack.c.b16 %v694, %v692
    %v861 = vpack.c.b16 %v695, %v693
    %v862 = vpack.c.b16 %v698, %v696
    %v863 = vpack.c.b16 %v699, %v697
    %v864 = vpack.c.b16 %v702, %v700
    %v865 = vpack.c.b16 %v703, %v701
    %v866 = vpack.c.b16 %v706, %v704
    %v867 = vpack.c.b16 %v707, %v705
    %v868 = vpack.c.b16 %v710, %v708
    %v869 = vpack.c.b16 %v711, %v709
    %v870 = vpack.c.b16 %v714, %v712
    %v871 = vpack.c.b16 %v715, %v713
    %v872 = vpack.c.b16 %v718, %v716
    %v873 = vpack.c.b16 %v719, %v717
    %v874 = vpack.c.b16 %v722, %v720
    %v875 = vpack.c.b16 %v723, %v721
    %v876 = vpack.c.b16 %v726, %v724
    %v877 = vpack.c.b16 %v727, %v725
    %v878 = vpack.c.b16 %v730, %v728
    %v879 = vpack.c.b16 %v731, %v729
    %v880 = vpack.c.b16 %v734, %v732
    %v881 = vpack.c.b16 %v735, %v733
    %v882 = vpack.c.b16 %v738, %v736
    %v883 = vpack.c.b16 %v739, %v737
    %v884 = vpack.c.b16 %v742, %v740
    %v885 = vpack.c.b16 %v743, %v741
    %v886 = vpack.c.b16 %v746, %v744
    %v887 = vpack.c.b16 %v747, %v745
    %v888 = vpack.c.b16 %v750, %v748
    %v889 = vpack.c.b16 %v751, %v749
    %v890 = vpack.c.b16 %v754, %v752
    %v891 = vpack.c.b16 %v755, %v753
    %v892 = vpack.c.b16 %v758, %v756
    %v893 = vpack.c.b16 %v759, %v757
    %v894 = vpack.c.b16 %v762, %v760
    %v895 = vpack.c.b16 %v763, %v761
    %v896 = vpack.c.b16 %v766, %v764
    %v897 = vpack.c.b16 %v767, %v765
    %v898 = vpack.c.b16 %v770, %v768
    %v899 = vpack.c.b16 %v771, %v769
    %1028 = vmatprep.subr.bf16.mxu0 %v773
    %1029 = vmatpush1.bf16.msra.mxu0 %v772
    %1030 = vmatprep.subr.bf16.mxu0 %v775
    %1031 = vmatpush1.bf16.msra.mxu0 %v774
    %1032 = vmatprep.subr.bf16.mxu0 %v777
    %1033 = vmatpush1.bf16.msra.mxu0 %v776
    %1034 = vmatprep.subr.bf16.mxu0 %v779
    %1035 = vmatpush1.bf16.msra.mxu0 %v778
    %1036 = vmatprep.subr.bf16.mxu0 %v781
    %1037 = vmatpush1.bf16.msra.mxu0 %v780
    %1038 = vmatprep.subr.bf16.mxu0 %v783
    %1039 = vmatpush1.bf16.msra.mxu0 %v782
    %1040 = vmatprep.subr.bf16.mxu0 %v785
    %1041 = vmatpush1.bf16.msra.mxu0 %v784
    %1042 = vmatprep.subr.bf16.mxu0 %v787
    %1043 = vmatpush1.bf16.msra.mxu0 %v786
    %1044 = vmatprep.subr.bf16.mxu0 %v789
    %1045 = vmatpush1.bf16.msra.mxu0 %v788
    %1046 = vmatprep.subr.bf16.mxu0 %v791
    %1047 = vmatpush1.bf16.msra.mxu0 %v790
    %1048 = vmatprep.subr.bf16.mxu0 %v793
    %1049 = vmatpush1.bf16.msra.mxu0 %v792
    %1050 = vmatprep.subr.bf16.mxu0 %v795
    %1051 = vmatpush1.bf16.msra.mxu0 %v794
    %1052 = vmatprep.subr.bf16.mxu0 %v797
    %1053 = vmatpush1.bf16.msra.mxu0 %v796
    %1054 = vmatprep.subr.bf16.mxu0 %v799
    %1055 = vmatpush1.bf16.msra.mxu0 %v798
    %1056 = vmatprep.subr.bf16.mxu0 %v801
    %1057 = vmatpush1.bf16.msra.mxu0 %v800
    %1058 = vmatprep.subr.bf16.mxu0 %v803
    %1059 = vmatpush1.bf16.msra.mxu0 %v802
    %1060 = vmatprep.mubr.bf16.mxu0 %v373
    %1061 = vmatmul.mubr.bf16.gmra.mrb[0].mxu0 %v372
    %v1062 = vpop.f32.mrb[0].mxu0
    %v1063 = vadd.f32 0.0, %v1062
    %v1064 = vpop.f32.mrb[0].mxu0
    %v1065 = vadd.f32 0.0, %v1064
    %v1066 = vpop.f32.mrb[0].mxu0
    %v1067 = vadd.f32 0.0, %v1066
    %v1068 = vpop.f32.mrb[0].mxu0
    %v1069 = vadd.f32 0.0, %v1068
    %1070 = vdwg.mxu0
    %1071 = vmatprep.subr.bf16.mxu0 %v805
    %1072 = vmatpush1.bf16.msra.mxu0 %v804
    %1073 = vmatprep.subr.bf16.mxu0 %v807
    %1074 = vmatpush1.bf16.msra.mxu0 %v806
    %1075 = vmatprep.subr.bf16.mxu0 %v809
    %1076 = vmatpush1.bf16.msra.mxu0 %v808
    %1077 = vmatprep.subr.bf16.mxu0 %v811
    %1078 = vmatpush1.bf16.msra.mxu0 %v810
    %1079 = vmatprep.subr.bf16.mxu0 %v813
    %1080 = vmatpush1.bf16.msra.mxu0 %v812
    %1081 = vmatprep.subr.bf16.mxu0 %v815
    %1082 = vmatpush1.bf16.msra.mxu0 %v814
    %1083 = vmatprep.subr.bf16.mxu0 %v817
    %1084 = vmatpush1.bf16.msra.mxu0 %v816
    %1085 = vmatprep.subr.bf16.mxu0 %v819
    %1086 = vmatpush1.bf16.msra.mxu0 %v818
    %1087 = vmatprep.subr.bf16.mxu0 %v821
    %1088 = vmatpush1.bf16.msra.mxu0 %v820
    %1089 = vmatprep.subr.bf16.mxu0 %v823
    %1090 = vmatpush1.bf16.msra.mxu0 %v822
    %1091 = vmatprep.subr.bf16.mxu0 %v825
    %1092 = vmatpush1.bf16.msra.mxu0 %v824
    %1093 = vmatprep.subr.bf16.mxu0 %v827
    %1094 = vmatpush1.bf16.msra.mxu0 %v826
    %1095 = vmatprep.subr.bf16.mxu0 %v829
    %1096 = vmatpush1.bf16.msra.mxu0 %v828
    %1097 = vmatprep.subr.bf16.mxu0 %v831
    %1098 = vmatpush1.bf16.msra.mxu0 %v830
    %1099 = vmatprep.subr.bf16.mxu0 %v833
    %1100 = vmatpush1.bf16.msra.mxu0 %v832
    %1101 = vmatprep.subr.bf16.mxu0 %v835
    %1102 = vmatpush1.bf16.msra.mxu0 %v834
    %1103 = vmatprep.mubr.bf16.mxu0 %v375
    %1104 = vmatmul.mubr.bf16.gmra.mrb[0].mxu0 %v374
    %v1105 = vpop.f32.mrb[0].mxu0
    %v1106 = vadd.f32 %v1063, %v1105
    %v1107 = vpop.f32.mrb[0].mxu0
    %v1108 = vadd.f32 %v1065, %v1107
    %v1109 = vpop.f32.mrb[0].mxu0
    %v1110 = vadd.f32 %v1067, %v1109
    %v1111 = vpop.f32.mrb[0].mxu0
    %v1112 = vadd.f32 %v1069, %v1111
    %1113 = vdwg.mxu0
    %1114 = vmatprep.subr.bf16.mxu0 %v837
    %1115 = vmatpush1.bf16.msra.mxu0 %v836
    %1116 = vmatprep.subr.bf16.mxu0 %v839
    %1117 = vmatpush1.bf16.msra.mxu0 %v838
    %1118 = vmatprep.subr.bf16.mxu0 %v841
    %1119 = vmatpush1.bf16.msra.mxu0 %v840
    %1120 = vmatprep.subr.bf16.mxu0 %v843
    %1121 = vmatpush1.bf16.msra.mxu0 %v842
    %1122 = vmatprep.subr.bf16.mxu0 %v845
    %1123 = vmatpush1.bf16.msra.mxu0 %v844
    %1124 = vmatprep.subr.bf16.mxu0 %v847
    %1125 = vmatpush1.bf16.msra.mxu0 %v846
    %1126 = vmatprep.subr.bf16.mxu0 %v849
    %1127 = vmatpush1.bf16.msra.mxu0 %v848
    %1128 = vmatprep.subr.bf16.mxu0 %v851
    %1129 = vmatpush1.bf16.msra.mxu0 %v850
    %1130 = vmatprep.subr.bf16.mxu0 %v853
    %1131 = vmatpush1.bf16.msra.mxu0 %v852
    %1132 = vmatprep.subr.bf16.mxu0 %v855
    %1133 = vmatpush1.bf16.msra.mxu0 %v854
    %1134 = vmatprep.subr.bf16.mxu0 %v857
    %1135 = vmatpush1.bf16.msra.mxu0 %v856
    %1136 = vmatprep.subr.bf16.mxu0 %v859
    %1137 = vmatpush1.bf16.msra.mxu0 %v858
    %1138 = vmatprep.subr.bf16.mxu0 %v861
    %1139 = vmatpush1.bf16.msra.mxu0 %v860
    %1140 = vmatprep.subr.bf16.mxu0 %v863
    %1141 = vmatpush1.bf16.msra.mxu0 %v862
    %1142 = vmatprep.subr.bf16.mxu0 %v865
    %1143 = vmatpush1.bf16.msra.mxu0 %v864
    %1144 = vmatprep.subr.bf16.mxu0 %v867
    %1145 = vmatpush1.bf16.msra.mxu0 %v866
    %1146 = vmatprep.mubr.bf16.mxu0 %v377
    %1147 = vmatmul.mubr.bf16.gmra.mrb[0].mxu0 %v376
    %v1148 = vpop.f32.mrb[0].mxu0
    %v1149 = vadd.f32 %v1106, %v1148
    %v1150 = vpop.f32.mrb[0].mxu0
    %v1151 = vadd.f32 %v1108, %v1150
    %v1152 = vpop.f32.mrb[0].mxu0
    %v1153 = vadd.f32 %v1110, %v1152
    %v1154 = vpop.f32.mrb[0].mxu0
    %v1155 = vadd.f32 %v1112, %v1154
    %1156 = vdwg.mxu0
    %1157 = vmatprep.subr.bf16.mxu0 %v869
    %1158 = vmatpush1.bf16.msra.mxu0 %v868
    %1159 = vmatprep.subr.bf16.mxu0 %v871
    %1160 = vmatpush1.bf16.msra.mxu0 %v870
    %1161 = vmatprep.subr.bf16.mxu0 %v873
    %1162 = vmatpush1.bf16.msra.mxu0 %v872
    %1163 = vmatprep.subr.bf16.mxu0 %v875
    %1164 = vmatpush1.bf16.msra.mxu0 %v874
    %1165 = vmatprep.subr.bf16.mxu0 %v877
    %1166 = vmatpush1.bf16.msra.mxu0 %v876
    %1167 = vmatprep.subr.bf16.mxu0 %v879
    %1168 = vmatpush1.bf16.msra.mxu0 %v878
    %1169 = vmatprep.subr.bf16.mxu0 %v881
    %1170 = vmatpush1.bf16.msra.mxu0 %v880
    %1171 = vmatprep.subr.bf16.mxu0 %v883
    %1172 = vmatpush1.bf16.msra.mxu0 %v882
    %1173 = vmatprep.subr.bf16.mxu0 %v885
    %1174 = vmatpush1.bf16.msra.mxu0 %v884
    %1175 = vmatprep.subr.bf16.mxu0 %v887
    %1176 = vmatpush1.bf16.msra.mxu0 %v886
    %1177 = vmatprep.subr.bf16.mxu0 %v889
    %1178 = vmatpush1.bf16.msra.mxu0 %v888
    %1179 = vmatprep.subr.bf16.mxu0 %v891
    %1180 = vmatpush1.bf16.msra.mxu0 %v890
    %1181 = vmatprep.subr.bf16.mxu0 %v893
    %1182 = vmatpush1.bf16.msra.mxu0 %v892
    %1183 = vmatprep.subr.bf16.mxu0 %v895
    %1184 = vmatpush1.bf16.msra.mxu0 %v894
    %1185 = vmatprep.subr.bf16.mxu0 %v897
    %1186 = vmatpush1.bf16.msra.mxu0 %v896
    %1187 = vmatprep.subr.bf16.mxu0 %v899
    %1188 = vmatpush1.bf16.msra.mxu0 %v898
    %1189 = vmatprep.mubr.bf16.mxu0 %v379
    %1190 = vmatmul.mubr.bf16.gmra.mrb[0].mxu0 %v378
    %v1191 = vpop.f32.mrb[0].mxu0
    %v1192 = vadd.f32 %v1149, %v1191
    %v1193 = vpop.f32.mrb[0].mxu0
    %v1194 = vadd.f32 %v1151, %v1193
    %v1195 = vpop.f32.mrb[0].mxu0
    %v1196 = vadd.f32 %v1153, %v1195
    %v1197 = vpop.f32.mrb[0].mxu0
    %v1198 = vadd.f32 %v1155, %v1197
    %1199 = vdwg.mxu0
    %v1208 = vunpack.c.l.b16 %v76
    %v1209 = vunpack.c.h.b16 %v76
    %v1210 = vunpack.c.l.b16 %v77
    %v1211 = vunpack.c.h.b16 %v77
    %v1212 = vunpack.c.l.b16 %v78
    %v1213 = vunpack.c.h.b16 %v78
    %v1214 = vunpack.c.l.b16 %v79
    %v1215 = vunpack.c.h.b16 %v79
    %v1216 = vunpack.c.l.b16 %v80
    %v1217 = vunpack.c.h.b16 %v80
    %v1218 = vunpack.c.l.b16 %v81
    %v1219 = vunpack.c.h.b16 %v81
    %v1220 = vunpack.c.l.b16 %v82
    %v1221 = vunpack.c.h.b16 %v82
    %v1222 = vunpack.c.l.b16 %v83
    %v1223 = vunpack.c.h.b16 %v83
    %v1224 = vpack.c.b16 %v1216, %v1208
    %v1225 = vpack.c.b16 %v1217, %v1209
    %v1226 = vpack.c.b16 %v1218, %v1210
    %v1227 = vpack.c.b16 %v1219, %v1211
    %v1228 = vpack.c.b16 %v1220, %v1212
    %v1229 = vpack.c.b16 %v1221, %v1213
    %v1230 = vpack.c.b16 %v1222, %v1214
    %v1231 = vpack.c.b16 %v1223, %v1215
    %v1368 = vunpack.c.l.b16 %v84
    %v1369 = vunpack.c.h.b16 %v84
    %v1370 = vunpack.c.l.b16 %v85
    %v1371 = vunpack.c.h.b16 %v85
    %v1372 = vunpack.c.l.b16 %v86
    %v1373 = vunpack.c.h.b16 %v86
    %v1374 = vunpack.c.l.b16 %v87
    %v1375 = vunpack.c.h.b16 %v87
    %v1376 = vunpack.c.l.b16 %v88
    %v1377 = vunpack.c.h.b16 %v88
    %v1378 = vunpack.c.l.b16 %v89
    %v1379 = vunpack.c.h.b16 %v89
    %v1380 = vunpack.c.l.b16 %v90
    %v1381 = vunpack.c.h.b16 %v90
    %v1382 = vunpack.c.l.b16 %v91
    %v1383 = vunpack.c.h.b16 %v91
    %v1384 = vunpack.c.l.b16 %v92
    %v1385 = vunpack.c.h.b16 %v92
    %v1386 = vunpack.c.l.b16 %v93
    %v1387 = vunpack.c.h.b16 %v93
    %v1388 = vunpack.c.l.b16 %v94
    %v1389 = vunpack.c.h.b16 %v94
    %v1390 = vunpack.c.l.b16 %v95
    %v1391 = vunpack.c.h.b16 %v95
    %v1392 = vunpack.c.l.b16 %v96
    %v1393 = vunpack.c.h.b16 %v96
    %v1394 = vunpack.c.l.b16 %v97
    %v1395 = vunpack.c.h.b16 %v97
    %v1396 = vunpack.c.l.b16 %v98
    %v1397 = vunpack.c.h.b16 %v98
    %v1398 = vunpack.c.l.b16 %v99
    %v1399 = vunpack.c.h.b16 %v99
    %v1400 = vunpack.c.l.b16 %v100
    %v1401 = vunpack.c.h.b16 %v100
    %v1402 = vunpack.c.l.b16 %v101
    %v1403 = vunpack.c.h.b16 %v101
    %v1404 = vunpack.c.l.b16 %v102
    %v1405 = vunpack.c.h.b16 %v102
    %v1406 = vunpack.c.l.b16 %v103
    %v1407 = vunpack.c.h.b16 %v103
    %v1408 = vunpack.c.l.b16 %v104
    %v1409 = vunpack.c.h.b16 %v104
    %v1410 = vunpack.c.l.b16 %v105
    %v1411 = vunpack.c.h.b16 %v105
    %v1412 = vunpack.c.l.b16 %v106
    %v1413 = vunpack.c.h.b16 %v106
    %v1414 = vunpack.c.l.b16 %v107
    %v1415 = vunpack.c.h.b16 %v107
    %v1416 = vunpack.c.l.b16 %v108
    %v1417 = vunpack.c.h.b16 %v108
    %v1418 = vunpack.c.l.b16 %v109
    %v1419 = vunpack.c.h.b16 %v109
    %v1420 = vunpack.c.l.b16 %v110
    %v1421 = vunpack.c.h.b16 %v110
    %v1422 = vunpack.c.l.b16 %v111
    %v1423 = vunpack.c.h.b16 %v111
    %v1424 = vunpack.c.l.b16 %v112
    %v1425 = vunpack.c.h.b16 %v112
    %v1426 = vunpack.c.l.b16 %v113
    %v1427 = vunpack.c.h.b16 %v113
    %v1428 = vunpack.c.l.b16 %v114
    %v1429 = vunpack.c.h.b16 %v114
    %v1430 = vunpack.c.l.b16 %v115
    %v1431 = vunpack.c.h.b16 %v115
    %v1432 = vunpack.c.l.b16 %v116
    %v1433 = vunpack.c.h.b16 %v116
    %v1434 = vunpack.c.l.b16 %v117
    %v1435 = vunpack.c.h.b16 %v117
    %v1436 = vunpack.c.l.b16 %v118
    %v1437 = vunpack.c.h.b16 %v118
    %v1438 = vunpack.c.l.b16 %v119
    %v1439 = vunpack.c.h.b16 %v119
    %v1440 = vunpack.c.l.b16 %v120
    %v1441 = vunpack.c.h.b16 %v120
    %v1442 = vunpack.c.l.b16 %v121
    %v1443 = vunpack.c.h.b16 %v121
    %v1444 = vunpack.c.l.b16 %v122
    %v1445 = vunpack.c.h.b16 %v122
    %v1446 = vunpack.c.l.b16 %v123
    %v1447 = vunpack.c.h.b16 %v123
    %v1448 = vunpack.c.l.b16 %v124
    %v1449 = vunpack.c.h.b16 %v124
    %v1450 = vunpack.c.l.b16 %v125
    %v1451 = vunpack.c.h.b16 %v125
    %v1452 = vunpack.c.l.b16 %v126
    %v1453 = vunpack.c.h.b16 %v126
    %v1454 = vunpack.c.l.b16 %v127
    %v1455 = vunpack.c.h.b16 %v127
    %v1456 = vunpack.c.l.b16 %v128
    %v1457 = vunpack.c.h.b16 %v128
    %v1458 = vunpack.c.l.b16 %v129
    %v1459 = vunpack.c.h.b16 %v129
    %v1460 = vunpack.c.l.b16 %v130
    %v1461 = vunpack.c.h.b16 %v130
    %v1462 = vunpack.c.l.b16 %v131
    %v1463 = vunpack.c.h.b16 %v131
    %v1464 = vunpack.c.l.b16 %v132
    %v1465 = vunpack.c.h.b16 %v132
    %v1466 = vunpack.c.l.b16 %v133
    %v1467 = vunpack.c.h.b16 %v133
    %v1468 = vunpack.c.l.b16 %v134
    %v1469 = vunpack.c.h.b16 %v134
    %v1470 = vunpack.c.l.b16 %v135
    %v1471 = vunpack.c.h.b16 %v135
    %v1472 = vunpack.c.l.b16 %v136
    %v1473 = vunpack.c.h.b16 %v136
    %v1474 = vunpack.c.l.b16 %v137
    %v1475 = vunpack.c.h.b16 %v137
    %v1476 = vunpack.c.l.b16 %v138
    %v1477 = vunpack.c.h.b16 %v138
    %v1478 = vunpack.c.l.b16 %v139
    %v1479 = vunpack.c.h.b16 %v139
    %v1480 = vunpack.c.l.b16 %v140
    %v1481 = vunpack.c.h.b16 %v140
    %v1482 = vunpack.c.l.b16 %v141
    %v1483 = vunpack.c.h.b16 %v141
    %v1484 = vunpack.c.l.b16 %v142
    %v1485 = vunpack.c.h.b16 %v142
    %v1486 = vunpack.c.l.b16 %v143
    %v1487 = vunpack.c.h.b16 %v143
    %v1488 = vunpack.c.l.b16 %v144
    %v1489 = vunpack.c.h.b16 %v144
    %v1490 = vunpack.c.l.b16 %v145
    %v1491 = vunpack.c.h.b16 %v145
    %v1492 = vunpack.c.l.b16 %v146
    %v1493 = vunpack.c.h.b16 %v146
    %v1494 = vunpack.c.l.b16 %v147
    %v1495 = vunpack.c.h.b16 %v147
    %v1496 = vunpack.c.l.b16 %v148
    %v1497 = vunpack.c.h.b16 %v148
    %v1498 = vunpack.c.l.b16 %v149
    %v1499 = vunpack.c.h.b16 %v149
    %v1500 = vunpack.c.l.b16 %v150
    %v1501 = vunpack.c.h.b16 %v150
    %v1502 = vunpack.c.l.b16 %v151
    %v1503 = vunpack.c.h.b16 %v151
    %v1504 = vunpack.c.l.b16 %v152
    %v1505 = vunpack.c.h.b16 %v152
    %v1506 = vunpack.c.l.b16 %v153
    %v1507 = vunpack.c.h.b16 %v153
    %v1508 = vunpack.c.l.b16 %v154
    %v1509 = vunpack.c.h.b16 %v154
    %v1510 = vunpack.c.l.b16 %v155
    %v1511 = vunpack.c.h.b16 %v155
    %v1512 = vunpack.c.l.b16 %v156
    %v1513 = vunpack.c.h.b16 %v156
    %v1514 = vunpack.c.l.b16 %v157
    %v1515 = vunpack.c.h.b16 %v157
    %v1516 = vunpack.c.l.b16 %v158
    %v1517 = vunpack.c.h.b16 %v158
    %v1518 = vunpack.c.l.b16 %v159
    %v1519 = vunpack.c.h.b16 %v159
    %v1520 = vunpack.c.l.b16 %v160
    %v1521 = vunpack.c.h.b16 %v160
    %v1522 = vunpack.c.l.b16 %v161
    %v1523 = vunpack.c.h.b16 %v161
    %v1524 = vunpack.c.l.b16 %v162
    %v1525 = vunpack.c.h.b16 %v162
    %v1526 = vunpack.c.l.b16 %v163
    %v1527 = vunpack.c.h.b16 %v163
    %v1528 = vunpack.c.l.b16 %v164
    %v1529 = vunpack.c.h.b16 %v164
    %v1530 = vunpack.c.l.b16 %v165
    %v1531 = vunpack.c.h.b16 %v165
    %v1532 = vunpack.c.l.b16 %v166
    %v1533 = vunpack.c.h.b16 %v166
    %v1534 = vunpack.c.l.b16 %v167
    %v1535 = vunpack.c.h.b16 %v167
    %v1536 = vunpack.c.l.b16 %v168
    %v1537 = vunpack.c.h.b16 %v168
    %v1538 = vunpack.c.l.b16 %v169
    %v1539 = vunpack.c.h.b16 %v169
    %v1540 = vunpack.c.l.b16 %v170
    %v1541 = vunpack.c.h.b16 %v170
    %v1542 = vunpack.c.l.b16 %v171
    %v1543 = vunpack.c.h.b16 %v171
    %v1544 = vunpack.c.l.b16 %v172
    %v1545 = vunpack.c.h.b16 %v172
    %v1546 = vunpack.c.l.b16 %v173
    %v1547 = vunpack.c.h.b16 %v173
    %v1548 = vunpack.c.l.b16 %v174
    %v1549 = vunpack.c.h.b16 %v174
    %v1550 = vunpack.c.l.b16 %v175
    %v1551 = vunpack.c.h.b16 %v175
    %v1552 = vunpack.c.l.b16 %v176
    %v1553 = vunpack.c.h.b16 %v176
    %v1554 = vunpack.c.l.b16 %v177
    %v1555 = vunpack.c.h.b16 %v177
    %v1556 = vunpack.c.l.b16 %v178
    %v1557 = vunpack.c.h.b16 %v178
    %v1558 = vunpack.c.l.b16 %v179
    %v1559 = vunpack.c.h.b16 %v179
    %v1560 = vunpack.c.l.b16 %v180
    %v1561 = vunpack.c.h.b16 %v180
    %v1562 = vunpack.c.l.b16 %v181
    %v1563 = vunpack.c.h.b16 %v181
    %v1564 = vunpack.c.l.b16 %v182
    %v1565 = vunpack.c.h.b16 %v182
    %v1566 = vunpack.c.l.b16 %v183
    %v1567 = vunpack.c.h.b16 %v183
    %v1568 = vunpack.c.l.b16 %v184
    %v1569 = vunpack.c.h.b16 %v184
    %v1570 = vunpack.c.l.b16 %v185
    %v1571 = vunpack.c.h.b16 %v185
    %v1572 = vunpack.c.l.b16 %v186
    %v1573 = vunpack.c.h.b16 %v186
    %v1574 = vunpack.c.l.b16 %v187
    %v1575 = vunpack.c.h.b16 %v187
    %v1576 = vunpack.c.l.b16 %v188
    %v1577 = vunpack.c.h.b16 %v188
    %v1578 = vunpack.c.l.b16 %v189
    %v1579 = vunpack.c.h.b16 %v189
    %v1580 = vunpack.c.l.b16 %v190
    %v1581 = vunpack.c.h.b16 %v190
    %v1582 = vunpack.c.l.b16 %v191
    %v1583 = vunpack.c.h.b16 %v191
    %v1584 = vunpack.c.l.b16 %v192
    %v1585 = vunpack.c.h.b16 %v192
    %v1586 = vunpack.c.l.b16 %v193
    %v1587 = vunpack.c.h.b16 %v193
    %v1588 = vunpack.c.l.b16 %v194
    %v1589 = vunpack.c.h.b16 %v194
    %v1590 = vunpack.c.l.b16 %v195
    %v1591 = vunpack.c.h.b16 %v195
    %v1592 = vunpack.c.l.b16 %v196
    %v1593 = vunpack.c.h.b16 %v196
    %v1594 = vunpack.c.l.b16 %v197
    %v1595 = vunpack.c.h.b16 %v197
    %v1596 = vunpack.c.l.b16 %v198
    %v1597 = vunpack.c.h.b16 %v198
    %v1598 = vunpack.c.l.b16 %v199
    %v1599 = vunpack.c.h.b16 %v199
    %v1600 = vunpack.c.l.b16 %v200
    %v1601 = vunpack.c.h.b16 %v200
    %v1602 = vunpack.c.l.b16 %v201
    %v1603 = vunpack.c.h.b16 %v201
    %v1604 = vunpack.c.l.b16 %v202
    %v1605 = vunpack.c.h.b16 %v202
    %v1606 = vunpack.c.l.b16 %v203
    %v1607 = vunpack.c.h.b16 %v203
    %v1608 = vunpack.c.l.b16 %v204
    %v1609 = vunpack.c.h.b16 %v204
    %v1610 = vunpack.c.l.b16 %v205
    %v1611 = vunpack.c.h.b16 %v205
    %v1612 = vunpack.c.l.b16 %v206
    %v1613 = vunpack.c.h.b16 %v206
    %v1614 = vunpack.c.l.b16 %v207
    %v1615 = vunpack.c.h.b16 %v207
    %v1616 = vunpack.c.l.b16 %v208
    %v1617 = vunpack.c.h.b16 %v208
    %v1618 = vunpack.c.l.b16 %v209
    %v1619 = vunpack.c.h.b16 %v209
    %v1620 = vunpack.c.l.b16 %v210
    %v1621 = vunpack.c.h.b16 %v210
    %v1622 = vunpack.c.l.b16 %v211
    %v1623 = vunpack.c.h.b16 %v211
    %v1624 = vpack.c.b16 %v1370, %v1368
    %v1625 = vpack.c.b16 %v1371, %v1369
    %v1626 = vpack.c.b16 %v1374, %v1372
    %v1627 = vpack.c.b16 %v1375, %v1373
    %v1628 = vpack.c.b16 %v1378, %v1376
    %v1629 = vpack.c.b16 %v1379, %v1377
    %v1630 = vpack.c.b16 %v1382, %v1380
    %v1631 = vpack.c.b16 %v1383, %v1381
    %v1632 = vpack.c.b16 %v1386, %v1384
    %v1633 = vpack.c.b16 %v1387, %v1385
    %v1634 = vpack.c.b16 %v1390, %v1388
    %v1635 = vpack.c.b16 %v1391, %v1389
    %v1636 = vpack.c.b16 %v1394, %v1392
    %v1637 = vpack.c.b16 %v1395, %v1393
    %v1638 = vpack.c.b16 %v1398, %v1396
    %v1639 = vpack.c.b16 %v1399, %v1397
    %v1640 = vpack.c.b16 %v1402, %v1400
    %v1641 = vpack.c.b16 %v1403, %v1401
    %v1642 = vpack.c.b16 %v1406, %v1404
    %v1643 = vpack.c.b16 %v1407, %v1405
    %v1644 = vpack.c.b16 %v1410, %v1408
    %v1645 = vpack.c.b16 %v1411, %v1409
    %v1646 = vpack.c.b16 %v1414, %v1412
    %v1647 = vpack.c.b16 %v1415, %v1413
    %v1648 = vpack.c.b16 %v1418, %v1416
    %v1649 = vpack.c.b16 %v1419, %v1417
    %v1650 = vpack.c.b16 %v1422, %v1420
    %v1651 = vpack.c.b16 %v1423, %v1421
    %v1652 = vpack.c.b16 %v1426, %v1424
    %v1653 = vpack.c.b16 %v1427, %v1425
    %v1654 = vpack.c.b16 %v1430, %v1428
    %v1655 = vpack.c.b16 %v1431, %v1429
    %v1656 = vpack.c.b16 %v1434, %v1432
    %v1657 = vpack.c.b16 %v1435, %v1433
    %v1658 = vpack.c.b16 %v1438, %v1436
    %v1659 = vpack.c.b16 %v1439, %v1437
    %v1660 = vpack.c.b16 %v1442, %v1440
    %v1661 = vpack.c.b16 %v1443, %v1441
    %v1662 = vpack.c.b16 %v1446, %v1444
    %v1663 = vpack.c.b16 %v1447, %v1445
    %v1664 = vpack.c.b16 %v1450, %v1448
    %v1665 = vpack.c.b16 %v1451, %v1449
    %v1666 = vpack.c.b16 %v1454, %v1452
    %v1667 = vpack.c.b16 %v1455, %v1453
    %v1668 = vpack.c.b16 %v1458, %v1456
    %v1669 = vpack.c.b16 %v1459, %v1457
    %v1670 = vpack.c.b16 %v1462, %v1460
    %v1671 = vpack.c.b16 %v1463, %v1461
    %v1672 = vpack.c.b16 %v1466, %v1464
    %v1673 = vpack.c.b16 %v1467, %v1465
    %v1674 = vpack.c.b16 %v1470, %v1468
    %v1675 = vpack.c.b16 %v1471, %v1469
    %v1676 = vpack.c.b16 %v1474, %v1472
    %v1677 = vpack.c.b16 %v1475, %v1473
    %v1678 = vpack.c.b16 %v1478, %v1476
    %v1679 = vpack.c.b16 %v1479, %v1477
    %v1680 = vpack.c.b16 %v1482, %v1480
    %v1681 = vpack.c.b16 %v1483, %v1481
    %v1682 = vpack.c.b16 %v1486, %v1484
    %v1683 = vpack.c.b16 %v1487, %v1485
    %v1684 = vpack.c.b16 %v1490, %v1488
    %v1685 = vpack.c.b16 %v1491, %v1489
    %v1686 = vpack.c.b16 %v1494, %v1492
    %v1687 = vpack.c.b16 %v1495, %v1493
    %v1688 = vpack.c.b16 %v1498, %v1496
    %v1689 = vpack.c.b16 %v1499, %v1497
    %v1690 = vpack.c.b16 %v1502, %v1500
    %v1691 = vpack.c.b16 %v1503, %v1501
    %v1692 = vpack.c.b16 %v1506, %v1504
    %v1693 = vpack.c.b16 %v1507, %v1505
    %v1694 = vpack.c.b16 %v1510, %v1508
    %v1695 = vpack.c.b16 %v1511, %v1509
    %v1696 = vpack.c.b16 %v1514, %v1512
    %v1697 = vpack.c.b16 %v1515, %v1513
    %v1698 = vpack.c.b16 %v1518, %v1516
    %v1699 = vpack.c.b16 %v1519, %v1517
    %v1700 = vpack.c.b16 %v1522, %v1520
    %v1701 = vpack.c.b16 %v1523, %v1521
    %v1702 = vpack.c.b16 %v1526, %v1524
    %v1703 = vpack.c.b16 %v1527, %v1525
    %v1704 = vpack.c.b16 %v1530, %v1528
    %v1705 = vpack.c.b16 %v1531, %v1529
    %v1706 = vpack.c.b16 %v1534, %v1532
    %v1707 = vpack.c.b16 %v1535, %v1533
    %v1708 = vpack.c.b16 %v1538, %v1536
    %v1709 = vpack.c.b16 %v1539, %v1537
    %v1710 = vpack.c.b16 %v1542, %v1540
    %v1711 = vpack.c.b16 %v1543, %v1541
    %v1712 = vpack.c.b16 %v1546, %v1544
    %v1713 = vpack.c.b16 %v1547, %v1545
    %v1714 = vpack.c.b16 %v1550, %v1548
    %v1715 = vpack.c.b16 %v1551, %v1549
    %v1716 = vpack.c.b16 %v1554, %v1552
    %v1717 = vpack.c.b16 %v1555, %v1553
    %v1718 = vpack.c.b16 %v1558, %v1556
    %v1719 = vpack.c.b16 %v1559, %v1557
    %v1720 = vpack.c.b16 %v1562, %v1560
    %v1721 = vpack.c.b16 %v1563, %v1561
    %v1722 = vpack.c.b16 %v1566, %v1564
    %v1723 = vpack.c.b16 %v1567, %v1565
    %v1724 = vpack.c.b16 %v1570, %v1568
    %v1725 = vpack.c.b16 %v1571, %v1569
    %v1726 = vpack.c.b16 %v1574, %v1572
    %v1727 = vpack.c.b16 %v1575, %v1573
    %v1728 = vpack.c.b16 %v1578, %v1576
    %v1729 = vpack.c.b16 %v1579, %v1577
    %v1730 = vpack.c.b16 %v1582, %v1580
    %v1731 = vpack.c.b16 %v1583, %v1581
    %v1732 = vpack.c.b16 %v1586, %v1584
    %v1733 = vpack.c.b16 %v1587, %v1585
    %v1734 = vpack.c.b16 %v1590, %v1588
    %v1735 = vpack.c.b16 %v1591, %v1589
    %v1736 = vpack.c.b16 %v1594, %v1592
    %v1737 = vpack.c.b16 %v1595, %v1593
    %v1738 = vpack.c.b16 %v1598, %v1596
    %v1739 = vpack.c.b16 %v1599, %v1597
    %v1740 = vpack.c.b16 %v1602, %v1600
    %v1741 = vpack.c.b16 %v1603, %v1601
    %v1742 = vpack.c.b16 %v1606, %v1604
    %v1743 = vpack.c.b16 %v1607, %v1605
    %v1744 = vpack.c.b16 %v1610, %v1608
    %v1745 = vpack.c.b16 %v1611, %v1609
    %v1746 = vpack.c.b16 %v1614, %v1612
    %v1747 = vpack.c.b16 %v1615, %v1613
    %v1748 = vpack.c.b16 %v1618, %v1616
    %v1749 = vpack.c.b16 %v1619, %v1617
    %v1750 = vpack.c.b16 %v1622, %v1620
    %v1751 = vpack.c.b16 %v1623, %v1621
    %1880 = vmatprep.subr.bf16.mxu0 %v1625
    %1881 = vmatpush1.bf16.msra.mxu0 %v1624
    %1882 = vmatprep.subr.bf16.mxu0 %v1627
    %1883 = vmatpush1.bf16.msra.mxu0 %v1626
    %1884 = vmatprep.subr.bf16.mxu0 %v1629
    %1885 = vmatpush1.bf16.msra.mxu0 %v1628
    %1886 = vmatprep.subr.bf16.mxu0 %v1631
    %1887 = vmatpush1.bf16.msra.mxu0 %v1630
    %1888 = vmatprep.subr.bf16.mxu0 %v1633
    %1889 = vmatpush1.bf16.msra.mxu0 %v1632
    %1890 = vmatprep.subr.bf16.mxu0 %v1635
    %1891 = vmatpush1.bf16.msra.mxu0 %v1634
    %1892 = vmatprep.subr.bf16.mxu0 %v1637
    %1893 = vmatpush1.bf16.msra.mxu0 %v1636
    %1894 = vmatprep.subr.bf16.mxu0 %v1639
    %1895 = vmatpush1.bf16.msra.mxu0 %v1638
    %1896 = vmatprep.subr.bf16.mxu0 %v1641
    %1897 = vmatpush1.bf16.msra.mxu0 %v1640
    %1898 = vmatprep.subr.bf16.mxu0 %v1643
    %1899 = vmatpush1.bf16.msra.mxu0 %v1642
    %1900 = vmatprep.subr.bf16.mxu0 %v1645
    %1901 = vmatpush1.bf16.msra.mxu0 %v1644
    %1902 = vmatprep.subr.bf16.mxu0 %v1647
    %1903 = vmatpush1.bf16.msra.mxu0 %v1646
    %1904 = vmatprep.subr.bf16.mxu0 %v1649
    %1905 = vmatpush1.bf16.msra.mxu0 %v1648
    %1906 = vmatprep.subr.bf16.mxu0 %v1651
    %1907 = vmatpush1.bf16.msra.mxu0 %v1650
    %1908 = vmatprep.subr.bf16.mxu0 %v1653
    %1909 = vmatpush1.bf16.msra.mxu0 %v1652
    %1910 = vmatprep.subr.bf16.mxu0 %v1655
    %1911 = vmatpush1.bf16.msra.mxu0 %v1654
    %1912 = vmatprep.mubr.bf16.mxu0 %v1225
    %1913 = vmatmul.mubr.bf16.gmra.mrb[0].mxu0 %v1224
    %v1914 = vpop.f32.mrb[0].mxu0
    %v1915 = vadd.f32 %v1192, %v1914
    %v1916 = vpop.f32.mrb[0].mxu0
    %v1917 = vadd.f32 %v1194, %v1916
    %v1918 = vpop.f32.mrb[0].mxu0
    %v1919 = vadd.f32 %v1196, %v1918
    %v1920 = vpop.f32.mrb[0].mxu0
    %v1921 = vadd.f32 %v1198, %v1920
    %1922 = vdwg.mxu0
    %1923 = vmatprep.subr.bf16.mxu0 %v1657
    %1924 = vmatpush1.bf16.msra.mxu0 %v1656
    %1925 = vmatprep.subr.bf16.mxu0 %v1659
    %1926 = vmatpush1.bf16.msra.mxu0 %v1658
    %1927 = vmatprep.subr.bf16.mxu0 %v1661
    %1928 = vmatpush1.bf16.msra.mxu0 %v1660
    %1929 = vmatprep.subr.bf16.mxu0 %v1663
    %1930 = vmatpush1.bf16.msra.mxu0 %v1662
    %1931 = vmatprep.subr.bf16.mxu0 %v1665
    %1932 = vmatpush1.bf16.msra.mxu0 %v1664
    %1933 = vmatprep.subr.bf16.mxu0 %v1667
    %1934 = vmatpush1.bf16.msra.mxu0 %v1666
    %1935 = vmatprep.subr.bf16.mxu0 %v1669
    %1936 = vmatpush1.bf16.msra.mxu0 %v1668
    %1937 = vmatprep.subr.bf16.mxu0 %v1671
    %1938 = vmatpush1.bf16.msra.mxu0 %v1670
    %1939 = vmatprep.subr.bf16.mxu0 %v1673
    %1940 = vmatpush1.bf16.msra.mxu0 %v1672
    %1941 = vmatprep.subr.bf16.mxu0 %v1675
    %1942 = vmatpush1.bf16.msra.mxu0 %v1674
    %1943 = vmatprep.subr.bf16.mxu0 %v1677
    %1944 = vmatpush1.bf16.msra.mxu0 %v1676
    %1945 = vmatprep.subr.bf16.mxu0 %v1679
    %1946 = vmatpush1.bf16.msra.mxu0 %v1678
    %1947 = vmatprep.subr.bf16.mxu0 %v1681
    %1948 = vmatpush1.bf16.msra.mxu0 %v1680
    %1949 = vmatprep.subr.bf16.mxu0 %v1683
    %1950 = vmatpush1.bf16.msra.mxu0 %v1682
    %1951 = vmatprep.subr.bf16.mxu0 %v1685
    %1952 = vmatpush1.bf16.msra.mxu0 %v1684
    %1953 = vmatprep.subr.bf16.mxu0 %v1687
    %1954 = vmatpush1.bf16.msra.mxu0 %v1686
    %1955 = vmatprep.mubr.bf16.mxu0 %v1227
    %1956 = vmatmul.mubr.bf16.gmra.mrb[0].mxu0 %v1226
    %v1957 = vpop.f32.mrb[0].mxu0
    %v1958 = vadd.f32 %v1915, %v1957
    %v1959 = vpop.f32.mrb[0].mxu0
    %v1960 = vadd.f32 %v1917, %v1959
    %v1961 = vpop.f32.mrb[0].mxu0
    %v1962 = vadd.f32 %v1919, %v1961
    %v1963 = vpop.f32.mrb[0].mxu0
    %v1964 = vadd.f32 %v1921, %v1963
    %1965 = vdwg.mxu0
    %1966 = vmatprep.subr.bf16.mxu0 %v1689
    %1967 = vmatpush1.bf16.msra.mxu0 %v1688
    %1968 = vmatprep.subr.bf16.mxu0 %v1691
    %1969 = vmatpush1.bf16.msra.mxu0 %v1690
    %1970 = vmatprep.subr.bf16.mxu0 %v1693
    %1971 = vmatpush1.bf16.msra.mxu0 %v1692
    %1972 = vmatprep.subr.bf16.mxu0 %v1695
    %1973 = vmatpush1.bf16.msra.mxu0 %v1694
    %1974 = vmatprep.subr.bf16.mxu0 %v1697
    %1975 = vmatpush1.bf16.msra.mxu0 %v1696
    %1976 = vmatprep.subr.bf16.mxu0 %v1699
    %1977 = vmatpush1.bf16.msra.mxu0 %v1698
    %1978 = vmatprep.subr.bf16.mxu0 %v1701
    %1979 = vmatpush1.bf16.msra.mxu0 %v1700
    %1980 = vmatprep.subr.bf16.mxu0 %v1703
    %1981 = vmatpush1.bf16.msra.mxu0 %v1702
    %1982 = vmatprep.subr.bf16.mxu0 %v1705
    %1983 = vmatpush1.bf16.msra.mxu0 %v1704
    %1984 = vmatprep.subr.bf16.mxu0 %v1707
    %1985 = vmatpush1.bf16.msra.mxu0 %v1706
    %1986 = vmatprep.subr.bf16.mxu0 %v1709
    %1987 = vmatpush1.bf16.msra.mxu0 %v1708
    %1988 = vmatprep.subr.bf16.mxu0 %v1711
    %1989 = vmatpush1.bf16.msra.mxu0 %v1710
    %1990 = vmatprep.subr.bf16.mxu0 %v1713
    %1991 = vmatpush1.bf16.msra.mxu0 %v1712
    %1992 = vmatprep.subr.bf16.mxu0 %v1715
    %1993 = vmatpush1.bf16.msra.mxu0 %v1714
    %1994 = vmatprep.subr.bf16.mxu0 %v1717
    %1995 = vmatpush1.bf16.msra.mxu0 %v1716
    %1996 = vmatprep.subr.bf16.mxu0 %v1719
    %1997 = vmatpush1.bf16.msra.mxu0 %v1718
    %1998 = vmatprep.mubr.bf16.mxu0 %v1229
    %1999 = vmatmul.mubr.bf16.gmra.mrb[0].mxu0 %v1228
    %v2000 = vpop.f32.mrb[0].mxu0
    %v2001 = vadd.f32 %v1958, %v2000
    %v2002 = vpop.f32.mrb[0].mxu0
    %v2003 = vadd.f32 %v1960, %v2002
    %v2004 = vpop.f32.mrb[0].mxu0
    %v2005 = vadd.f32 %v1962, %v2004
    %v2006 = vpop.f32.mrb[0].mxu0
    %v2007 = vadd.f32 %v1964, %v2006
    %2008 = vdwg.mxu0
    %2009 = vmatprep.subr.bf16.mxu0 %v1721
    %2010 = vmatpush1.bf16.msra.mxu0 %v1720
    %2011 = vmatprep.subr.bf16.mxu0 %v1723
    %2012 = vmatpush1.bf16.msra.mxu0 %v1722
    %2013 = vmatprep.subr.bf16.mxu0 %v1725
    %2014 = vmatpush1.bf16.msra.mxu0 %v1724
    %2015 = vmatprep.subr.bf16.mxu0 %v1727
    %2016 = vmatpush1.bf16.msra.mxu0 %v1726
    %2017 = vmatprep.subr.bf16.mxu0 %v1729
    %2018 = vmatpush1.bf16.msra.mxu0 %v1728
    %2019 = vmatprep.subr.bf16.mxu0 %v1731
    %2020 = vmatpush1.bf16.msra.mxu0 %v1730
    %2021 = vmatprep.subr.bf16.mxu0 %v1733
    %2022 = vmatpush1.bf16.msra.mxu0 %v1732
    %2023 = vmatprep.subr.bf16.mxu0 %v1735
    %2024 = vmatpush1.bf16.msra.mxu0 %v1734
    %2025 = vmatprep.subr.bf16.mxu0 %v1737
    %2026 = vmatpush1.bf16.msra.mxu0 %v1736
    %2027 = vmatprep.subr.bf16.mxu0 %v1739
    %2028 = vmatpush1.bf16.msra.mxu0 %v1738
    %2029 = vmatprep.subr.bf16.mxu0 %v1741
    %2030 = vmatpush1.bf16.msra.mxu0 %v1740
    %2031 = vmatprep.subr.bf16.mxu0 %v1743
    %2032 = vmatpush1.bf16.msra.mxu0 %v1742
    %2033 = vmatprep.subr.bf16.mxu0 %v1745
    %2034 = vmatpush1.bf16.msra.mxu0 %v1744
    %2035 = vmatprep.subr.bf16.mxu0 %v1747
    %2036 = vmatpush1.bf16.msra.mxu0 %v1746
    %2037 = vmatprep.subr.bf16.mxu0 %v1749
    %2038 = vmatpush1.bf16.msra.mxu0 %v1748
    %2039 = vmatprep.subr.bf16.mxu0 %v1751
    %2040 = vmatpush1.bf16.msra.mxu0 %v1750
    %2041 = vmatprep.mubr.bf16.mxu0 %v1231
    %2042 = vmatmul.mubr.bf16.gmra.mrb[0].mxu0 %v1230
    %v2043 = vpop.f32.mrb[0].mxu0
    %v2044 = vadd.f32 %v2001, %v2043
    %v2045 = vpop.f32.mrb[0].mxu0
    %v2046 = vadd.f32 %v2003, %v2045
    %v2047 = vpop.f32.mrb[0].mxu0
    %v2048 = vadd.f32 %v2005, %v2047
    %v2049 = vpop.f32.mrb[0].mxu0
    %v2050 = vadd.f32 %v2007, %v2049
    %2051 = vdwg.mxu0
    %v2052 = vld [vmem:[%s4] sm:$0x3]
    %v2054 = vlaneseq
    %v2055 = vshrl.u32 %v2054, 7
    %v2056 = vsub.s32 0, %v2055
    %v2057 = vrot.slane %v2052, %v2056
    %v2058 = vlaneseq
    %v2059 = vshrl.u32 %v2058, 7
    %v2060 = vsub.s32 1, %v2059
    %v2061 = vrot.slane %v2052, %v2060
    %v2064 = vadd.f32 %v2044, %v2057
    %v2065 = vadd.f32 %v2046, %v2061
    %v2066 = vadd.f32 %v2048, %v2057
    %v2067 = vadd.f32 %v2050, %v2061
    %2068 = vst [vmem:[#allocation10] sm:$0xff] %v2064
    %2069 = vst [vmem:[#allocation10 + $0x8] sm:$0xff] %v2065
    %2070 = vst [vmem:[#allocation10 + $0x10] sm:$0xff] %v2066
    %2071 = vst [vmem:[#allocation10 + $0x18] sm:$0xff] %v2067
    // Predicated region
    $region38: #{tpu_custom_call.1} parent=1 // pred_check
      _
    $region39: #{tpu_custom_call.1} parent=1 // pred_check_branch
      %2073 = sbr.rel (0) target = $region41
    $region40: #{tpu_custom_call.1} parent=1 // pred_region
      %s2075 = ssub.s32 512, 512
      %2076 = vsyncadd [#allocation4], %s2075
      %s2077 = sshll.u32 [#allocation10], 4
      %s2078 = int_to_ptr.vmem [resolvable:$true] %s2077
      %2083 = dma.vmem_to_hbm [thread:$0]  %s2078, 512, %s5, [#allocation4], 256, 256, 16
    $region41: #{tpu_custom_call.1} parent=1 // pred_fallthru
      _
    // Predicated region
    $region42: #{tpu_custom_call.1} parent=1 // pred_check
      _
    $region43: #{tpu_custom_call.1} parent=1 // pred_check_branch
      %2085 = sbr.rel (0) target = $region45
    $region44: #{tpu_custom_call.1} parent=1 // pred_region
      %2086 = dma.done [#allocation4], 512
    $region45: #{tpu_custom_call.1} parent=1 // pred_fallthru
      _
    %2087 = vsyncpa [#allocation3], 1
    %2088 = vsyncpa [#allocation6], 1
    %2089 = vsyncpa [#allocation9], 1
    %2090 = vsyncpa [#allocation4], 1

</llo_original>
